<compile_context>
chip_gen: v5e
topology: v5e:2x2
jax: 0.10.0
libtpu: 0.0.40
codegen_flags: <defaults>
</compile_context>

<pallas_src>
import functools
import math

import jax
import jax.numpy as jnp
from jax.experimental import pallas as pl
from jax.experimental.pallas import tpu as pltpu


# ----------------------------------------------------------- kernel helpers ---

def _log_softmax(logits):
    m = jnp.max(logits, axis=-1, keepdims=True)
    z = logits - m
    lse = jnp.log(jnp.sum(jnp.exp(z), axis=-1, keepdims=True))
    return z - lse


def _l2_normalize(d):
    # matches torch _l2_normalize: per-sample L2 norm over flattened dims + 1e-8.
    # reciprocal on the [TB,1] vector only; broadcast-multiply does the rest.
    norm = jnp.sqrt(jnp.sum(d * d, axis=1, keepdims=True))
    inv = 1.0 / (norm + 1e-8)
    return d * inv


# ----------------------------------------------------------------- kernel ---

def vat_fused_kernel(x_ref, d0_ref, w_ref, wt_ref, b_ref, loss_ref,
                     *, xi, eps, ip, inv_b):
    tile = pl.program_id(0)

    @pl.when(tile == 0)
    def _init():
        loss_ref[0, 0] = 0.0

    w = w_ref[...]        # [D, Kp] bf16 (forward layout)
    wt = wt_ref[...]      # [Kp, D] bf16 (gradient layout)
    bias = b_ref[...]     # [1, Kp] f32 (-1e9 on pad classes)

    # --- clean forward (torch no_grad): pred = softmax(model(x), dim=1) ---
    x_bf = x_ref[...].astype(w.dtype)                                   # cast x once
    clean = jnp.dot(x_bf, w, preferred_element_type=jnp.float32) + bias  # [TB, Kp]
    logp_pred = _log_softmax(clean)
    pred = jnp.exp(logp_pred)

    # --- d = rand(x.shape) - 0.5 (host-generated) ; d = _l2_normalize(d) ---
    d = _l2_normalize(d0_ref[...])

    # --- power iteration ---------------------------------------------------
    # For the linear model: logits(x + c*d) = clean + c * (d @ W), and
    # grad_d KL(pred || softmax_hat) = (xi/B) * (softmax_hat - pred) @ W^T;
    # the positive scale cancels under normalization and is omitted.
    for _ in range(ip):   # ip is small & static (default 1); Python loop is fine
        pert = jnp.dot(d.astype(w.dtype), w,
                       preferred_element_type=jnp.float32)              # [TB, Kp]
        p_hat = jnp.exp(_log_softmax(clean + xi * pert))
        diff = (p_hat - pred).astype(wt.dtype)                          # [TB, Kp]
        g = jnp.dot(diff, wt, preferred_element_type=jnp.float32)       # [TB, D]
        d = _l2_normalize(g)

    # --- lds = F.kl_div(log_softmax(model(x + eps*d)), pred, 'batchmean') ---
    pert = jnp.dot(d.astype(w.dtype), w, preferred_element_type=jnp.float32)
    logp_hat = _log_softmax(clean + eps * pert)
    pointwise = pred * (logp_pred - logp_hat)   # NaN-safe: stored log_softmax
    loss_ref[0, 0] += jnp.sum(pointwise) * inv_b


# ---------------------------------------------------------------- wrapper ---

def vat_loss(x, w, b, noise, *, xi=10.0, eps=1.0, ip=1):
    """VATLoss.forward with a fixed linear model (logits = x_flat @ W + b)."""
    B = x.shape[0]
    D = int(math.prod(x.shape[1:]))
    K = w.shape[1]
    x_flat = x.reshape(B, D).astype(jnp.float32)        # torch .view(B, -1)
    d0 = noise.reshape(B, D).astype(jnp.float32)        # rand - 0.5, flattened

    # pad classes K -> Kp (multiple of 128) for lane density; pad cols of W are
    # zero and pad bias entries are a large NEGATIVE FINITE value so pad-class
    # probabilities are exactly 0 (no 0 * inf NaN in the KL).
    Kp = ((K + 127) // 128) * 128
    w_pad = jnp.zeros((D, Kp), jnp.float32).at[:, :K].set(w.astype(jnp.float32))
    w_bf = w_pad.astype(jnp.bfloat16)                   # [D, Kp]  forward layout
    wt_bf = w_pad.T.astype(jnp.bfloat16)                # [Kp, D]  gradient layout
    b_pad = jnp.full((1, Kp), -1e9, jnp.float32).at[0, :K].set(
        b.reshape(-1).astype(jnp.float32))

    # batch tiling: multiple-of-8 tiles when possible, else one full-batch tile.
    if B % 8 == 0:
        tb = 8
        while tb * 2 <= min(B, 256) and B % (tb * 2) == 0:
            tb *= 2
    else:
        tb = B
    num_tiles = B // tb

    kernel = functools.partial(
        vat_fused_kernel,
        xi=float(xi), eps=float(eps), ip=int(ip), inv_b=1.0 / float(B))

    loss = pl.pallas_call(
        kernel,
        out_shape=jax.ShapeDtypeStruct((1, 1), jnp.float32),
        grid=(num_tiles,),
        in_specs=[
            pl.BlockSpec((tb, D), lambda i: (i, 0)),     # x tile
            pl.BlockSpec((tb, D), lambda i: (i, 0)),     # noise tile
            pl.BlockSpec((D, Kp), lambda i: (0, 0)),     # W  [D, Kp] bf16
            pl.BlockSpec((Kp, D), lambda i: (0, 0)),     # Wt [Kp, D] bf16
            pl.BlockSpec((1, Kp), lambda i: (0, 0)),     # bias [1, Kp]
        ],
        out_specs=pl.BlockSpec(memory_space=pltpu.MemorySpace.SMEM),
        compiler_params=pltpu.CompilerParams(
            # accumulator across batch tiles -> reduction axis is "arbitrary".
            # (At many tiles on v7x one would emit per-tile partial sums with a
            #  "parallel" axis and reduce in the wrapper; with a single tile
            #  here the accumulator is equivalent.)
            dimension_semantics=("arbitrary",)),
    )(x_flat, d0, w_bf, wt_bf, b_pad)
    return loss[0, 0]


# ---------------------------------------------------- pure-JAX reference ---

def _vat_loss_ref(x_flat, d0, w_bf, wt_bf, b_pad, *, xi, eps, ip):
    def log_softmax(l):
        m = jnp.max(l, axis=-1, keepdims=True)
        z = l - m
        return z - jnp.log(jnp.sum(jnp.exp(z), axis=-1, keepdims=True))

    def l2n(d):
        n = jnp.sqrt(jnp.sum(d * d, axis=1, keepdims=True))
        return d * (1.0 / (n + 1e-8))

    B = x_flat.shape[0]
    clean = jnp.dot(x_flat.astype(jnp.bfloat16), w_bf,
                    preferred_element_type=jnp.float32) + b_pad
    logp_pred = log_softmax(clean)
    pred = jnp.exp(logp_pred)
    d = l2n(d0)
    for _ in range(ip):
        pert = jnp.dot(d.astype(jnp.bfloat16), w_bf,
                       preferred_element_type=jnp.float32)
        p_hat = jnp.exp(log_softmax(clean + xi * pert))
        g = jnp.dot((p_hat - pred).astype(jnp.bfloat16), wt_bf,
                    preferred_element_type=jnp.float32)
        d = l2n(g)
    pert = jnp.dot(d.astype(jnp.bfloat16), w_bf, preferred_element_type=jnp.float32)
    logp_hat = log_softmax(clean + eps * pert)
    return jnp.sum(pred * (logp_pred - logp_hat)) / B


# ------------------------------------------------------------------- main ---

if __name__ == "__main__":
    key = jax.random.PRNGKey(0)
    kx, kw, kb, kd = jax.random.split(key, 4)

    B, C, H, W = 2, 4, 16, 16   # NCHW input, small shapes
    K = 32                      # number of classes
    D = C * H * W               # 1024

    x = jax.random.normal(kx, (B, C, H, W), dtype=jnp.float32)
    # deterministic synthetic "model" parameters
    w = jax.random.normal(kw, (D, K), dtype=jnp.float32) * 0.05
    b = jax.random.normal(kb, (K,), dtype=jnp.float32) * 0.01
    # d = torch.rand(x.shape) - 0.5  (host-side RNG; in-kernel pltpu.prng_*
    # removed because it has no interpret/CPU lowering)
    noise = jax.random.uniform(kd, (B, C, H, W), dtype=jnp.float32) - 0.5

    lds = vat_loss(x, w, b, noise, xi=10.0, eps=1.0, ip=1)
    lds = jax.block_until_ready(lds)
    assert jnp.isfinite(lds), "VAT loss is not finite"

    # pure-JAX reference (identical padded/bf16 math) with a loose tolerance
    Kp = ((K + 127) // 128) * 128
    w_pad = jnp.zeros((D, Kp), jnp.float32).at[:, :K].set(w)
    b_pad = jnp.full((1, Kp), -1e9, jnp.float32).at[0, :K].set(b)
    ref = _vat_loss_ref(x.reshape(B, D), noise.reshape(B, D),
                        w_pad.astype(jnp.bfloat16), w_pad.T.astype(jnp.bfloat16),
                        b_pad, xi=10.0, eps=1.0, ip=1)
    assert jnp.allclose(lds, ref, rtol=5e-2, atol=1e-5), (lds, ref)

    print("KERNEL_OK")
</pallas_src>

<mosaic_0001>
module attributes {stable_mosaic.version = 11 : i64} {
  func.func @vat_fused_kernel(%arg0: i32, %arg1: memref<2x1024xf32, #tpu.memory_space<vmem>>, %arg2: memref<2x1024xf32, #tpu.memory_space<vmem>>, %arg3: memref<1024x128xbf16, #tpu.memory_space<vmem>>, %arg4: memref<128x1024xbf16, #tpu.memory_space<vmem>>, %arg5: memref<1x128xf32, #tpu.memory_space<vmem>>, %arg6: memref<1x1xf32, #tpu.memory_space<smem>>) attributes {dimension_semantics = [#tpu.dimension_semantics<arbitrary>], iteration_bounds = array<i64: 1>, scalar_prefetch = 0 : i64, scratch_operands = 0 : i64, tpu.core_type = #tpu.core_type<tc>, window_params = [{transform_indices = @transform_0, window_bounds = array<i64: 2, 1024>}, {transform_indices = @transform_1, window_bounds = array<i64: 2, 1024>}, {pipeline_mode = #tpu.pipeline_mode<synchronous>, transform_indices = @transform_2, window_bounds = array<i64: 1024, 128>}, {pipeline_mode = #tpu.pipeline_mode<synchronous>, transform_indices = @transform_3, window_bounds = array<i64: 128, 1024>}, {pipeline_mode = #tpu.pipeline_mode<synchronous>, transform_indices = @transform_4, window_bounds = array<i64: 1, 128>}, {transform_indices = @transform_5, window_bounds = array<i64: 1, 1>}]} {
    %c0_i32 = arith.constant 0 : i32
    %0 = arith.cmpi eq, %arg0, %c0_i32 : i32
    %1 = arith.extui %0 : i1 to i32
    %c0_i32_0 = arith.constant 0 : i32
    %2 = arith.cmpi ne, %1, %c0_i32_0 : i32
    scf.if %2 {
      %cst_33 = arith.constant 0.000000e+00 : f32
      %c0_34 = arith.constant 0 : index
      %c0_35 = arith.constant 0 : index
      %87 = memref.load %arg6[%c0_34, %c0_35] : memref<1x1xf32, #tpu.memory_space<smem>>
      memref.store %cst_33, %arg6[%c0_34, %c0_35] : memref<1x1xf32, #tpu.memory_space<smem>>
    } else {
    }
    %c0 = arith.constant 0 : index
    %c0_1 = arith.constant 0 : index
    %3 = vector.load %arg3[%c0, %c0_1] : memref<1024x128xbf16, #tpu.memory_space<vmem>>, vector<1024x128xbf16>
    %c0_2 = arith.constant 0 : index
    %c0_3 = arith.constant 0 : index
    %4 = vector.load %arg4[%c0_2, %c0_3] : memref<128x1024xbf16, #tpu.memory_space<vmem>>, vector<128x1024xbf16>
    %c0_4 = arith.constant 0 : index
    %c0_5 = arith.constant 0 : index
    %5 = vector.load %arg5[%c0_4, %c0_5] : memref<1x128xf32, #tpu.memory_space<vmem>>, vector<1x128xf32>
    %c0_6 = arith.constant 0 : index
    %c0_7 = arith.constant 0 : index
    %6 = vector.load %arg1[%c0_6, %c0_7] : memref<2x1024xf32, #tpu.memory_space<vmem>>, vector<2x1024xf32>
    %7 = arith.truncf %6 : vector<2x1024xf32> to vector<2x1024xbf16>
    %cst = arith.constant dense<0.000000e+00> : vector<2x128xf32>
    %8 = tpu.matmul %7, %3, %cst {dimension_numbers = #tpu.dot_dimension_numbers<[1], [0], [0], [1], [0, 0, 1, 1], [], []>} : vector<2x1024xbf16>, vector<1024x128xbf16>, vector<2x128xf32> -> vector<2x128xf32>
    %9 = vector.broadcast %5 : vector<1x128xf32> to vector<2x128xf32>
    %10 = arith.addf %8, %9 : vector<2x128xf32>
    %cst_8 = arith.constant dense<0xFF800000> : vector<2xf32>
    %11 = vector.multi_reduction <maximumf>, %10, %cst_8 [1] : vector<2x128xf32> to vector<2xf32>
    %12 = vector.shape_cast %11 : vector<2xf32> to vector<2x1xf32>
    %13 = vector.broadcast %12 : vector<2x1xf32> to vector<2x128xf32>
    %14 = arith.subf %10, %13 : vector<2x128xf32>
    %15 = math.exp %14 : vector<2x128xf32>
    %cst_9 = arith.constant dense<0.000000e+00> : vector<2xf32>
    %16 = vector.multi_reduction <add>, %15, %cst_9 [1] : vector<2x128xf32> to vector<2xf32>
    %17 = vector.shape_cast %16 : vector<2xf32> to vector<2x1xf32>
    %18 = math.log %17 : vector<2x1xf32>
    %19 = vector.broadcast %18 : vector<2x1xf32> to vector<2x128xf32>
    %20 = arith.subf %14, %19 : vector<2x128xf32>
    %21 = math.exp %20 : vector<2x128xf32>
    %c0_10 = arith.constant 0 : index
    %c0_11 = arith.constant 0 : index
    %22 = vector.load %arg2[%c0_10, %c0_11] : memref<2x1024xf32, #tpu.memory_space<vmem>>, vector<2x1024xf32>
    %23 = arith.mulf %22, %22 : vector<2x1024xf32>
    %cst_12 = arith.constant dense<0.000000e+00> : vector<2xf32>
    %24 = vector.multi_reduction <add>, %23, %cst_12 [1] : vector<2x1024xf32> to vector<2xf32>
    %25 = vector.shape_cast %24 : vector<2xf32> to vector<2x1xf32>
    %26 = math.sqrt %25 : vector<2x1xf32>
    %cst_13 = arith.constant 9.99999993E-9 : f32
    %27 = vector.broadcast %cst_13 : f32 to vector<2x1xf32>
    %28 = arith.addf %26, %27 : vector<2x1xf32>
    %cst_14 = arith.constant 1.000000e+00 : f32
    %29 = vector.broadcast %cst_14 : f32 to vector<2x1xf32>
    %30 = arith.divf %29, %28 : vector<2x1xf32>
    %31 = vector.broadcast %30 : vector<2x1xf32> to vector<2x1024xf32>
    %32 = arith.mulf %22, %31 : vector<2x1024xf32>
    %33 = arith.truncf %32 : vector<2x1024xf32> to vector<2x1024xbf16>
    %cst_15 = arith.constant dense<0.000000e+00> : vector<2x128xf32>
    %34 = tpu.matmul %33, %3, %cst_15 {dimension_numbers = #tpu.dot_dimension_numbers<[1], [0], [0], [1], [0, 0, 1, 1], [], []>} : vector<2x1024xbf16>, vector<1024x128xbf16>, vector<2x128xf32> -> vector<2x128xf32>
    %cst_16 = arith.constant 1.000000e+01 : f32
    %35 = vector.broadcast %cst_16 : f32 to vector<2x128xf32>
    %36 = arith.mulf %35, %34 : vector<2x128xf32>
    %37 = arith.addf %10, %36 : vector<2x128xf32>
    %cst_17 = arith.constant dense<0xFF800000> : vector<2xf32>
    %38 = vector.multi_reduction <maximumf>, %37, %cst_17 [1] : vector<2x128xf32> to vector<2xf32>
    %39 = vector.shape_cast %38 : vector<2xf32> to vector<2x1xf32>
    %40 = vector.broadcast %39 : vector<2x1xf32> to vector<2x128xf32>
    %41 = arith.subf %37, %40 : vector<2x128xf32>
    %42 = math.exp %41 : vector<2x128xf32>
    %cst_18 = arith.constant dense<0.000000e+00> : vector<2xf32>
    %43 = vector.multi_reduction <add>, %42, %cst_18 [1] : vector<2x128xf32> to vector<2xf32>
    %44 = vector.shape_cast %43 : vector<2xf32> to vector<2x1xf32>
    %45 = math.log %44 : vector<2x1xf32>
    %46 = vector.broadcast %45 : vector<2x1xf32> to vector<2x128xf32>
    %47 = arith.subf %41, %46 : vector<2x128xf32>
    %48 = math.exp %47 : vector<2x128xf32>
    %49 = arith.subf %48, %21 : vector<2x128xf32>
    %50 = arith.truncf %49 : vector<2x128xf32> to vector<2x128xbf16>
    %cst_19 = arith.constant dense<0.000000e+00> : vector<2x1024xf32>
    %51 = tpu.matmul %50, %4, %cst_19 {dimension_numbers = #tpu.dot_dimension_numbers<[1], [0], [0], [1], [0, 0, 1, 1], [], []>} : vector<2x128xbf16>, vector<128x1024xbf16>, vector<2x1024xf32> -> vector<2x1024xf32>
    %52 = arith.mulf %51, %51 : vector<2x1024xf32>
    %cst_20 = arith.constant dense<0.000000e+00> : vector<2xf32>
    %53 = vector.multi_reduction <add>, %52, %cst_20 [1] : vector<2x1024xf32> to vector<2xf32>
    %54 = vector.shape_cast %53 : vector<2xf32> to vector<2x1xf32>
    %55 = math.sqrt %54 : vector<2x1xf32>
    %cst_21 = arith.constant 9.99999993E-9 : f32
    %56 = vector.broadcast %cst_21 : f32 to vector<2x1xf32>
    %57 = arith.addf %55, %56 : vector<2x1xf32>
    %cst_22 = arith.constant 1.000000e+00 : f32
    %58 = vector.broadcast %cst_22 : f32 to vector<2x1xf32>
    %59 = arith.divf %58, %57 : vector<2x1xf32>
    %60 = vector.broadcast %59 : vector<2x1xf32> to vector<2x1024xf32>
    %61 = arith.mulf %51, %60 : vector<2x1024xf32>
    %62 = arith.truncf %61 : vector<2x1024xf32> to vector<2x1024xbf16>
    %cst_23 = arith.constant dense<0.000000e+00> : vector<2x128xf32>
    %63 = tpu.matmul %62, %3, %cst_23 {dimension_numbers = #tpu.dot_dimension_numbers<[1], [0], [0], [1], [0, 0, 1, 1], [], []>} : vector<2x1024xbf16>, vector<1024x128xbf16>, vector<2x128xf32> -> vector<2x128xf32>
    %cst_24 = arith.constant 1.000000e+00 : f32
    %64 = vector.broadcast %cst_24 : f32 to vector<2x128xf32>
    %65 = arith.mulf %64, %63 : vector<2x128xf32>
    %66 = arith.addf %10, %65 : vector<2x128xf32>
    %cst_25 = arith.constant dense<0xFF800000> : vector<2xf32>
    %67 = vector.multi_reduction <maximumf>, %66, %cst_25 [1] : vector<2x128xf32> to vector<2xf32>
    %68 = vector.shape_cast %67 : vector<2xf32> to vector<2x1xf32>
    %69 = vector.broadcast %68 : vector<2x1xf32> to vector<2x128xf32>
    %70 = arith.subf %66, %69 : vector<2x128xf32>
    %71 = math.exp %70 : vector<2x128xf32>
    %cst_26 = arith.constant dense<0.000000e+00> : vector<2xf32>
    %72 = vector.multi_reduction <add>, %71, %cst_26 [1] : vector<2x128xf32> to vector<2xf32>
    %73 = vector.shape_cast %72 : vector<2xf32> to vector<2x1xf32>
    %74 = math.log %73 : vector<2x1xf32>
    %75 = vector.broadcast %74 : vector<2x1xf32> to vector<2x128xf32>
    %76 = arith.subf %70, %75 : vector<2x128xf32>
    %77 = arith.subf %20, %76 : vector<2x128xf32>
    %78 = arith.mulf %21, %77 : vector<2x128xf32>
    %c0_27 = arith.constant 0 : index
    %c0_28 = arith.constant 0 : index
    %79 = memref.load %arg6[%c0_27, %c0_28] : memref<1x1xf32, #tpu.memory_space<smem>>
    %80 = vector.shape_cast %78 : vector<2x128xf32> to vector<1x2x128xf32>
    %cst_29 = arith.constant dense<0.000000e+00> : vector<1xf32>
    %81 = vector.multi_reduction <add>, %80, %cst_29 [1, 2] : vector<1x2x128xf32> to vector<1xf32>
    %82 = vector.shape_cast %81 : vector<1xf32> to vector<1x1x1xf32>
    %83 = vector.extract %82[0, 0, 0] : f32 from vector<1x1x1xf32>
    %cst_30 = arith.constant 5.000000e-01 : f32
    %84 = arith.mulf %83, %cst_30 : f32
    %85 = arith.addf %79, %84 : f32
    %c0_31 = arith.constant 0 : index
    %c0_32 = arith.constant 0 : index
    %86 = memref.load %arg6[%c0_31, %c0_32] : memref<1x1xf32, #tpu.memory_space<smem>>
    memref.store %85, %arg6[%c0_31, %c0_32] : memref<1x1xf32, #tpu.memory_space<smem>>
    return
  }
  func.func @transform_0(%arg0: i32) -> (i32, i32) {
    %c0_i32 = arith.constant 0 : i32
    %c0_i32_0 = arith.constant 0 : i32
    return %arg0, %c0_i32 : i32, i32
  }
  func.func @transform_1(%arg0: i32) -> (i32, i32) {
    %c0_i32 = arith.constant 0 : i32
    %c0_i32_0 = arith.constant 0 : i32
    return %arg0, %c0_i32 : i32, i32
  }
  func.func @transform_2(%arg0: i32) -> (i32, i32) {
    %c0_i32 = arith.constant 0 : i32
    %c0_i32_0 = arith.constant 0 : i32
    %c0_i32_1 = arith.constant 0 : i32
    return %c0_i32, %c0_i32_0 : i32, i32
  }
  func.func @transform_3(%arg0: i32) -> (i32, i32) {
    %c0_i32 = arith.constant 0 : i32
    %c0_i32_0 = arith.constant 0 : i32
    %c0_i32_1 = arith.constant 0 : i32
    return %c0_i32, %c0_i32_0 : i32, i32
  }
  func.func @transform_4(%arg0: i32) -> (i32, i32) {
    %c0_i32 = arith.constant 0 : i32
    %c0_i32_0 = arith.constant 0 : i32
    %c0_i32_1 = arith.constant 0 : i32
    return %c0_i32, %c0_i32_0 : i32, i32
  }
  func.func @transform_5(%arg0: i32) -> (i32, i32) {
    %c0_i32 = arith.constant 0 : i32
    %c0_i32_0 = arith.constant 0 : i32
    %c0_i32_1 = arith.constant 0 : i32
    return %c0_i32, %c0_i32_0 : i32, i32
  }
}

</mosaic_0001>

<llo_original>
// kernel: tpu_custom_call.1
$region0: #{tpu_custom_call.1}
  #allocation0 [shape = 'u32[]', space=smem, size = 0x4, offset = 0x4, fixed_abs, tag = 'smem constant byte address 0x4 - core index']
  #allocation1 [shape = 'u32[72,128]{1,0:T(1,128)}', space=vmem, size = 0x9000, scoped, tag = 'internal scratch']
  %s0 = inlined_call_operand.hbm [shape: f32[2,1024], index: 0, kind: input, shape index: {}]
  %s1 = inlined_call_operand.hbm [shape: f32[2,1024], index: 1, kind: input, shape index: {}]
  %s2 = inlined_call_operand.hbm [shape: bf16[1024,128], index: 2, kind: input, shape index: {}]
  %s3 = inlined_call_operand.hbm [shape: bf16[128,1024], index: 3, kind: input, shape index: {}]
  %s4 = inlined_call_operand.vmem [shape: f32[1,128], index: 4, kind: input, shape index: {}]
  %s5 = inlined_call_operand.hbm [shape: f32[1,1], index: 5, kind: output, shape index: {}]
  %s6 = sld [smem:[#allocation0]]
  $region50: #{tpu_custom_call.1} parent=0
    _
  %s8 = ssub.s32 1, %s6
  %s9 = scalar_select 0, %s8, %s6
  $region1: #{tpu_custom_call.1} parent=0
    #allocation2 [shape = 'u8[8192]{0}', space=vmem, size = 0x2000, scoped, tag = 'input window, operand 0, single buffered']
    #allocation3 [shape = 's32[1]{0}', space=sflag, size = 0x4, scoped, tag = 'scoped memory for tpu_custom_call.1']
    #allocation4 [shape = 's32[1]{0}', space=sflag, size = 0x4, scoped, tag = 'scoped memory for tpu_custom_call.1']
    #allocation5 [shape = 'u8[8192]{0}', space=vmem, size = 0x2000, scoped, tag = 'input window, operand 1, single buffered']
    #allocation6 [shape = 's32[1]{0}', space=sflag, size = 0x4, scoped, tag = 'scoped memory for tpu_custom_call.1']
    #allocation7 [shape = 'u8[262144]{0}', space=vmem, size = 0x40000, scoped, tag = 'input window, operand 2, single buffered']
    #allocation8 [shape = 'u8[262144]{0}', space=vmem, size = 0x40000, scoped, tag = 'input window, operand 3, single buffered']
    #allocation9 [shape = 's32[1]{0}', space=sflag, size = 0x4, scoped, tag = 'scoped memory for tpu_custom_call.1']
    #allocation10 [shape = 'u8[512]{0}', space=smem, size = 0x200, scoped, tag = 'output window, operand 0, single buffered']
    %10 = vsyncpa [#allocation3], 0
    %11 = vsyncpa [#allocation6], 0
    %12 = vsyncpa [#allocation9], 0
    %13 = vsyncpa [#allocation4], 0
    // Predicated region
    $region2: #{tpu_custom_call.1} parent=1 // pred_check
      _
    $region3: #{tpu_custom_call.1} parent=1 // pred_check_branch
      %15 = sbr.rel (0) target = $region5
    $region4: #{tpu_custom_call.1} parent=1 // pred_region
      %17 = vsyncadd [#allocation3], 0
      %s19 = sshll.u32 %s0, 4
      %s20 = int_to_ptr.hbm [resolvable:$true] %s19
      %s21 = sshll.u32 [#allocation2], 4
      %s22 = int_to_ptr.vmem [resolvable:$true] %s21
      %24 = dma.hbm_to_vmem [thread:$0]  %s20, 256, %s22, [#allocation3]
    $region5: #{tpu_custom_call.1} parent=1 // pred_fallthru
      _
    // Predicated region
    $region6: #{tpu_custom_call.1} parent=1 // pred_check
      _
    $region7: #{tpu_custom_call.1} parent=1 // pred_check_branch
      %26 = sbr.rel (0) target = $region9
    $region8: #{tpu_custom_call.1} parent=1 // pred_region
      %28 = vsyncadd [#allocation6], 0
      %s30 = sshll.u32 %s1, 4
      %s31 = int_to_ptr.hbm [resolvable:$true] %s30
      %s32 = sshll.u32 [#allocation5], 4
      %s33 = int_to_ptr.vmem [resolvable:$true] %s32
      %35 = dma.hbm_to_vmem [thread:$0]  %s31, 256, %s33, [#allocation6]
    $region9: #{tpu_custom_call.1} parent=1 // pred_fallthru
      _
    // Predicated region
    $region10: #{tpu_custom_call.1} parent=1 // pred_check
      _
    $region11: #{tpu_custom_call.1} parent=1 // pred_check_branch
      %37 = sbr.rel (0) target = $region13
    $region12: #{tpu_custom_call.1} parent=1 // pred_region
      %39 = vsyncadd [#allocation6], 0
      %s40 = sshll.u32 %s2, 4
      %s41 = int_to_ptr.hbm [resolvable:$true] %s40
      %s42 = sshll.u32 [#allocation7], 4
      %s43 = int_to_ptr.vmem [resolvable:$true] %s42
      %48 = dma.hbm_to_vmem [thread:$0]  %s41, 8192, %s43, [#allocation6], 64, 64, 4
    $region13: #{tpu_custom_call.1} parent=1 // pred_fallthru
      _
    // Predicated region
    $region14: #{tpu_custom_call.1} parent=1 // pred_check
      _
    $region15: #{tpu_custom_call.1} parent=1 // pred_check_branch
      %50 = sbr.rel (0) target = $region17
    $region16: #{tpu_custom_call.1} parent=1 // pred_region
      %52 = vsyncadd [#allocation9], 0
      %s53 = sshll.u32 %s3, 4
      %s54 = int_to_ptr.hbm [resolvable:$true] %s53
      %s55 = sshll.u32 [#allocation8], 4
      %s56 = int_to_ptr.vmem [resolvable:$true] %s55
      %61 = dma.hbm_to_vmem [thread:$0]  %s54, 8192, %s56, [#allocation9], 512, 512, 32
    $region17: #{tpu_custom_call.1} parent=1 // pred_fallthru
      _
    // Predicated region
    $region18: #{tpu_custom_call.1} parent=1 // pred_check
      _
    $region19: #{tpu_custom_call.1} parent=1 // pred_check_branch
      %63 = sbr.rel (0) target = $region21
    $region20: #{tpu_custom_call.1} parent=1 // pred_region
      _
    $region21: #{tpu_custom_call.1} parent=1 // pred_fallthru
      _
    // Predicated region
    $region22: #{tpu_custom_call.1} parent=1 // pred_check
      _
    $region23: #{tpu_custom_call.1} parent=1 // pred_check_branch
      %65 = sbr.rel (0) target = $region25
    $region24: #{tpu_custom_call.1} parent=1 // pred_region
      %67 = dma.done [#allocation3], 256
    $region25: #{tpu_custom_call.1} parent=1 // pred_fallthru
      _
    // Predicated region
    $region26: #{tpu_custom_call.1} parent=1 // pred_check
      _
    $region27: #{tpu_custom_call.1} parent=1 // pred_check_branch
      %69 = sbr.rel (0) target = $region29
    $region28: #{tpu_custom_call.1} parent=1 // pred_region
      %71 = dma.done [#allocation6], 256
    $region29: #{tpu_custom_call.1} parent=1 // pred_fallthru
      _
    // Predicated region
    $region30: #{tpu_custom_call.1} parent=1 // pred_check
      _
    $region31: #{tpu_custom_call.1} parent=1 // pred_check_branch
      %73 = sbr.rel (0) target = $region33
    $region32: #{tpu_custom_call.1} parent=1 // pred_region
      %75 = dma.done [#allocation6], 8192
    $region33: #{tpu_custom_call.1} parent=1 // pred_fallthru
      _
    // Predicated region
    $region34: #{tpu_custom_call.1} parent=1 // pred_check
      _
    $region35: #{tpu_custom_call.1} parent=1 // pred_check_branch
      %77 = sbr.rel (0) target = $region37
    $region36: #{tpu_custom_call.1} parent=1 // pred_region
      %79 = dma.done [#allocation9], 8192
    $region37: #{tpu_custom_call.1} parent=1 // pred_fallthru
      _
    %p80 = scmp.eq.s32.totalorder 0, 0
    // Predicated region
    $region38: #{tpu_custom_call.1} parent=1 // pred_check
      %p81 = pneg %p80
    $region39: #{tpu_custom_call.1} parent=1 // pred_check_branch
      %83 = sbr.rel (%p81) target = $region41
    $region40: #{tpu_custom_call.1} parent=1 // pred_region
      %s84 = scalar_lea.smem [#allocation10], 0
      %85 = sst [smem:[%s84]] 0.0
    $region41: #{tpu_custom_call.1} parent=1 // pred_fallthru
      _
    %v86 = vld [vmem:[#allocation7] sm:$0xf]
    %v87 = vld [vmem:[#allocation7 + $0x4] sm:$0xf]
    %v88 = vld [vmem:[#allocation7 + $0x8] sm:$0xf]
    %v89 = vld [vmem:[#allocation7 + $0xc] sm:$0xf]
    %v90 = vld [vmem:[#allocation7 + $0x10] sm:$0xf]
    %v91 = vld [vmem:[#allocation7 + $0x14] sm:$0xf]
    %v92 = vld [vmem:[#allocation7 + $0x18] sm:$0xf]
    %v93 = vld [vmem:[#allocation7 + $0x1c] sm:$0xf]
    %v94 = vld [vmem:[#allocation7 + $0x20] sm:$0xf]
    %v95 = vld [vmem:[#allocation7 + $0x24] sm:$0xf]
    %v96 = vld [vmem:[#allocation7 + $0x28] sm:$0xf]
    %v97 = vld [vmem:[#allocation7 + $0x2c] sm:$0xf]
    %v98 = vld [vmem:[#allocation7 + $0x30] sm:$0xf]
    %v99 = vld [vmem:[#allocation7 + $0x34] sm:$0xf]
    %v100 = vld [vmem:[#allocation7 + $0x38] sm:$0xf]
    %v101 = vld [vmem:[#allocation7 + $0x3c] sm:$0xf]
    %v102 = vld [vmem:[#allocation7 + $0x40] sm:$0xf]
    %v103 = vld [vmem:[#allocation7 + $0x44] sm:$0xf]
    %v104 = vld [vmem:[#allocation7 + $0x48] sm:$0xf]
    %v105 = vld [vmem:[#allocation7 + $0x4c] sm:$0xf]
    %v106 = vld [vmem:[#allocation7 + $0x50] sm:$0xf]
    %v107 = vld [vmem:[#allocation7 + $0x54] sm:$0xf]
    %v108 = vld [vmem:[#allocation7 + $0x58] sm:$0xf]
    %v109 = vld [vmem:[#allocation7 + $0x5c] sm:$0xf]
    %v110 = vld [vmem:[#allocation7 + $0x60] sm:$0xf]
    %v111 = vld [vmem:[#allocation7 + $0x64] sm:$0xf]
    %v112 = vld [vmem:[#allocation7 + $0x68] sm:$0xf]
    %v113 = vld [vmem:[#allocation7 + $0x6c] sm:$0xf]
    %v114 = vld [vmem:[#allocation7 + $0x70] sm:$0xf]
    %v115 = vld [vmem:[#allocation7 + $0x74] sm:$0xf]
    %v116 = vld [vmem:[#allocation7 + $0x78] sm:$0xf]
    %v117 = vld [vmem:[#allocation7 + $0x7c] sm:$0xf]
    %v118 = vld [vmem:[#allocation7 + $0x80] sm:$0xf]
    %v119 = vld [vmem:[#allocation7 + $0x84] sm:$0xf]
    %v120 = vld [vmem:[#allocation7 + $0x88] sm:$0xf]
    %v121 = vld [vmem:[#allocation7 + $0x8c] sm:$0xf]
    %v122 = vld [vmem:[#allocation7 + $0x90] sm:$0xf]
    %v123 = vld [vmem:[#allocation7 + $0x94] sm:$0xf]
    %v124 = vld [vmem:[#allocation7 + $0x98] sm:$0xf]
    %v125 = vld [vmem:[#allocation7 + $0x9c] sm:$0xf]
    %v126 = vld [vmem:[#allocation7 + $0xa0] sm:$0xf]
    %v127 = vld [vmem:[#allocation7 + $0xa4] sm:$0xf]
    %v128 = vld [vmem:[#allocation7 + $0xa8] sm:$0xf]
    %v129 = vld [vmem:[#allocation7 + $0xac] sm:$0xf]
    %v130 = vld [vmem:[#allocation7 + $0xb0] sm:$0xf]
    %v131 = vld [vmem:[#allocation7 + $0xb4] sm:$0xf]
    %v132 = vld [vmem:[#allocation7 + $0xb8] sm:$0xf]
    %v133 = vld [vmem:[#allocation7 + $0xbc] sm:$0xf]
    %v134 = vld [vmem:[#allocation7 + $0xc0] sm:$0xf]
    %v135 = vld [vmem:[#allocation7 + $0xc4] sm:$0xf]
    %v136 = vld [vmem:[#allocation7 + $0xc8] sm:$0xf]
    %v137 = vld [vmem:[#allocation7 + $0xcc] sm:$0xf]
    %v138 = vld [vmem:[#allocation7 + $0xd0] sm:$0xf]
    %v139 = vld [vmem:[#allocation7 + $0xd4] sm:$0xf]
    %v140 = vld [vmem:[#allocation7 + $0xd8] sm:$0xf]
    %v141 = vld [vmem:[#allocation7 + $0xdc] sm:$0xf]
    %v142 = vld [vmem:[#allocation7 + $0xe0] sm:$0xf]
    %v143 = vld [vmem:[#allocation7 + $0xe4] sm:$0xf]
    %v144 = vld [vmem:[#allocation7 + $0xe8] sm:$0xf]
    %v145 = vld [vmem:[#allocation7 + $0xec] sm:$0xf]
    %v146 = vld [vmem:[#allocation7 + $0xf0] sm:$0xf]
    %v147 = vld [vmem:[#allocation7 + $0xf4] sm:$0xf]
    %v148 = vld [vmem:[#allocation7 + $0xf8] sm:$0xf]
    %v149 = vld [vmem:[#allocation7 + $0xfc] sm:$0xf]
    %v150 = vld [vmem:[#allocation7 + $0x100] sm:$0xf]
    %v151 = vld [vmem:[#allocation7 + $0x104] sm:$0xf]
    %v152 = vld [vmem:[#allocation7 + $0x108] sm:$0xf]
    %v153 = vld [vmem:[#allocation7 + $0x10c] sm:$0xf]
    %v154 = vld [vmem:[#allocation7 + $0x110] sm:$0xf]
    %v155 = vld [vmem:[#allocation7 + $0x114] sm:$0xf]
    %v156 = vld [vmem:[#allocation7 + $0x118] sm:$0xf]
    %v157 = vld [vmem:[#allocation7 + $0x11c] sm:$0xf]
    %v158 = vld [vmem:[#allocation7 + $0x120] sm:$0xf]
    %v159 = vld [vmem:[#allocation7 + $0x124] sm:$0xf]
    %v160 = vld [vmem:[#allocation7 + $0x128] sm:$0xf]
    %v161 = vld [vmem:[#allocation7 + $0x12c] sm:$0xf]
    %v162 = vld [vmem:[#allocation7 + $0x130] sm:$0xf]
    %v163 = vld [vmem:[#allocation7 + $0x134] sm:$0xf]
    %v164 = vld [vmem:[#allocation7 + $0x138] sm:$0xf]
    %v165 = vld [vmem:[#allocation7 + $0x13c] sm:$0xf]
    %v166 = vld [vmem:[#allocation7 + $0x140] sm:$0xf]
    %v167 = vld [vmem:[#allocation7 + $0x144] sm:$0xf]
    %v168 = vld [vmem:[#allocation7 + $0x148] sm:$0xf]
    %v169 = vld [vmem:[#allocation7 + $0x14c] sm:$0xf]
    %v170 = vld [vmem:[#allocation7 + $0x150] sm:$0xf]
    %v171 = vld [vmem:[#allocation7 + $0x154] sm:$0xf]
    %v172 = vld [vmem:[#allocation7 + $0x158] sm:$0xf]
    %v173 = vld [vmem:[#allocation7 + $0x15c] sm:$0xf]
    %v174 = vld [vmem:[#allocation7 + $0x160] sm:$0xf]
    %v175 = vld [vmem:[#allocation7 + $0x164] sm:$0xf]
    %v176 = vld [vmem:[#allocation7 + $0x168] sm:$0xf]
    %v177 = vld [vmem:[#allocation7 + $0x16c] sm:$0xf]
    %v178 = vld [vmem:[#allocation7 + $0x170] sm:$0xf]
    %v179 = vld [vmem:[#allocation7 + $0x174] sm:$0xf]
    %v180 = vld [vmem:[#allocation7 + $0x178] sm:$0xf]
    %v181 = vld [vmem:[#allocation7 + $0x17c] sm:$0xf]
    %v182 = vld [vmem:[#allocation7 + $0x180] sm:$0xf]
    %v183 = vld [vmem:[#allocation7 + $0x184] sm:$0xf]
    %v184 = vld [vmem:[#allocation7 + $0x188] sm:$0xf]
    %v185 = vld [vmem:[#allocation7 + $0x18c] sm:$0xf]
    %v186 = vld [vmem:[#allocation7 + $0x190] sm:$0xf]
    %v187 = vld [vmem:[#allocation7 + $0x194] sm:$0xf]
    %v188 = vld [vmem:[#allocation7 + $0x198] sm:$0xf]
    %v189 = vld [vmem:[#allocation7 + $0x19c] sm:$0xf]
    %v190 = vld [vmem:[#allocation7 + $0x1a0] sm:$0xf]
    %v191 = vld [vmem:[#allocation7 + $0x1a4] sm:$0xf]
    %v192 = vld [vmem:[#allocation7 + $0x1a8] sm:$0xf]
    %v193 = vld [vmem:[#allocation7 + $0x1ac] sm:$0xf]
    %v194 = vld [vmem:[#allocation7 + $0x1b0] sm:$0xf]
    %v195 = vld [vmem:[#allocation7 + $0x1b4] sm:$0xf]
    %v196 = vld [vmem:[#allocation7 + $0x1b8] sm:$0xf]
    %v197 = vld [vmem:[#allocation7 + $0x1bc] sm:$0xf]
    %v198 = vld [vmem:[#allocation7 + $0x1c0] sm:$0xf]
    %v199 = vld [vmem:[#allocation7 + $0x1c4] sm:$0xf]
    %v200 = vld [vmem:[#allocation7 + $0x1c8] sm:$0xf]
    %v201 = vld [vmem:[#allocation7 + $0x1cc] sm:$0xf]
    %v202 = vld [vmem:[#allocation7 + $0x1d0] sm:$0xf]
    %v203 = vld [vmem:[#allocation7 + $0x1d4] sm:$0xf]
    %v204 = vld [vmem:[#allocation7 + $0x1d8] sm:$0xf]
    %v205 = vld [vmem:[#allocation7 + $0x1dc] sm:$0xf]
    %v206 = vld [vmem:[#allocation7 + $0x1e0] sm:$0xf]
    %v207 = vld [vmem:[#allocation7 + $0x1e4] sm:$0xf]
    %v208 = vld [vmem:[#allocation7 + $0x1e8] sm:$0xf]
    %v209 = vld [vmem:[#allocation7 + $0x1ec] sm:$0xf]
    %v210 = vld [vmem:[#allocation7 + $0x1f0] sm:$0xf]
    %v211 = vld [vmem:[#allocation7 + $0x1f4] sm:$0xf]
    %v212 = vld [vmem:[#allocation7 + $0x1f8] sm:$0xf]
    %v213 = vld [vmem:[#allocation7 + $0x1fc] sm:$0xf]
    %v214 = vld [vmem:[#allocation8] sm:$0xff]
    %v215 = vld [vmem:[#allocation8 + $0x8] sm:$0xff]
    %v216 = vld [vmem:[#allocation8 + $0x10] sm:$0xff]
    %v217 = vld [vmem:[#allocation8 + $0x18] sm:$0xff]
    %v218 = vld [vmem:[#allocation8 + $0x20] sm:$0xff]
    %v219 = vld [vmem:[#allocation8 + $0x28] sm:$0xff]
    %v220 = vld [vmem:[#allocation8 + $0x30] sm:$0xff]
    %v221 = vld [vmem:[#allocation8 + $0x38] sm:$0xff]
    %v222 = vld [vmem:[#allocation8 + $0x40] sm:$0xff]
    %v223 = vld [vmem:[#allocation8 + $0x48] sm:$0xff]
    %v224 = vld [vmem:[#allocation8 + $0x50] sm:$0xff]
    %v225 = vld [vmem:[#allocation8 + $0x58] sm:$0xff]
    %v226 = vld [vmem:[#allocation8 + $0x60] sm:$0xff]
    %v227 = vld [vmem:[#allocation8 + $0x68] sm:$0xff]
    %v228 = vld [vmem:[#allocation8 + $0x70] sm:$0xff]
    %v229 = vld [vmem:[#allocation8 + $0x78] sm:$0xff]
    %v230 = vld [vmem:[#allocation8 + $0x80] sm:$0xff]
    %v231 = vld [vmem:[#allocation8 + $0x88] sm:$0xff]
    %v232 = vld [vmem:[#allocation8 + $0x90] sm:$0xff]
    %v233 = vld [vmem:[#allocation8 + $0x98] sm:$0xff]
    %v234 = vld [vmem:[#allocation8 + $0xa0] sm:$0xff]
    %v235 = vld [vmem:[#allocation8 + $0xa8] sm:$0xff]
    %v236 = vld [vmem:[#allocation8 + $0xb0] sm:$0xff]
    %v237 = vld [vmem:[#allocation8 + $0xb8] sm:$0xff]
    %v238 = vld [vmem:[#allocation8 + $0xc0] sm:$0xff]
    %v239 = vld [vmem:[#allocation8 + $0xc8] sm:$0xff]
    %v240 = vld [vmem:[#allocation8 + $0xd0] sm:$0xff]
    %v241 = vld [vmem:[#allocation8 + $0xd8] sm:$0xff]
    %v242 = vld [vmem:[#allocation8 + $0xe0] sm:$0xff]
    %v243 = vld [vmem:[#allocation8 + $0xe8] sm:$0xff]
    %v244 = vld [vmem:[#allocation8 + $0xf0] sm:$0xff]
    %v245 = vld [vmem:[#allocation8 + $0xf8] sm:$0xff]
    %v246 = vld [vmem:[#allocation8 + $0x100] sm:$0xff]
    %v247 = vld [vmem:[#allocation8 + $0x108] sm:$0xff]
    %v248 = vld [vmem:[#allocation8 + $0x110] sm:$0xff]
    %v249 = vld [vmem:[#allocation8 + $0x118] sm:$0xff]
    %v250 = vld [vmem:[#allocation8 + $0x120] sm:$0xff]
    %v251 = vld [vmem:[#allocation8 + $0x128] sm:$0xff]
    %v252 = vld [vmem:[#allocation8 + $0x130] sm:$0xff]
    %v253 = vld [vmem:[#allocation8 + $0x138] sm:$0xff]
    %v254 = vld [vmem:[#allocation8 + $0x140] sm:$0xff]
    %v255 = vld [vmem:[#allocation8 + $0x148] sm:$0xff]
    %v256 = vld [vmem:[#allocation8 + $0x150] sm:$0xff]
    %v257 = vld [vmem:[#allocation8 + $0x158] sm:$0xff]
    %v258 = vld [vmem:[#allocation8 + $0x160] sm:$0xff]
    %v259 = vld [vmem:[#allocation8 + $0x168] sm:$0xff]
    %v260 = vld [vmem:[#allocation8 + $0x170] sm:$0xff]
    %v261 = vld [vmem:[#allocation8 + $0x178] sm:$0xff]
    %v262 = vld [vmem:[#allocation8 + $0x180] sm:$0xff]
    %v263 = vld [vmem:[#allocation8 + $0x188] sm:$0xff]
    %v264 = vld [vmem:[#allocation8 + $0x190] sm:$0xff]
    %v265 = vld [vmem:[#allocation8 + $0x198] sm:$0xff]
    %v266 = vld [vmem:[#allocation8 + $0x1a0] sm:$0xff]
    %v267 = vld [vmem:[#allocation8 + $0x1a8] sm:$0xff]
    %v268 = vld [vmem:[#allocation8 + $0x1b0] sm:$0xff]
    %v269 = vld [vmem:[#allocation8 + $0x1b8] sm:$0xff]
    %v270 = vld [vmem:[#allocation8 + $0x1c0] sm:$0xff]
    %v271 = vld [vmem:[#allocation8 + $0x1c8] sm:$0xff]
    %v272 = vld [vmem:[#allocation8 + $0x1d0] sm:$0xff]
    %v273 = vld [vmem:[#allocation8 + $0x1d8] sm:$0xff]
    %v274 = vld [vmem:[#allocation8 + $0x1e0] sm:$0xff]
    %v275 = vld [vmem:[#allocation8 + $0x1e8] sm:$0xff]
    %v276 = vld [vmem:[#allocation8 + $0x1f0] sm:$0xff]
    %v277 = vld [vmem:[#allocation8 + $0x1f8] sm:$0xff]
    %v278 = vld [vmem:[%s4] sm:$0x1]
    %v279 = vld [vmem:[#allocation2] sm:$0xff]
    %v280 = vld [vmem:[#allocation2 + $0x8] sm:$0xff]
    %283 = vst [vmem:[#allocation1] ss:$4 sm:$0xff] %v279
    %s284 = scalar_lea.vmem [#allocation1], 32
    %285 = vst [vmem:[%s284] ss:$4 sm:$0xff] %v280
    %v286 = vld.sshfl [vmem:[#allocation1] sm:$0xff pattern:$0x73625140]
    %v287 = vld.sshfl [vmem:[#allocation1 + $0x8] sm:$0xff pattern:$0x73625140]
    %v288 = vld.sshfl [vmem:[#allocation1 + $0x10] sm:$0xff pattern:$0x73625140]
    %v289 = vld.sshfl [vmem:[#allocation1 + $0x18] sm:$0xff pattern:$0x73625140]
    %v290 = vld.sshfl [vmem:[#allocation1 + $0x20] sm:$0xff pattern:$0x73625140]
    %v291 = vld.sshfl [vmem:[#allocation1 + $0x28] sm:$0xff pattern:$0x73625140]
    %v292 = vld.sshfl [vmem:[#allocation1 + $0x30] sm:$0xff pattern:$0x73625140]
    %v293 = vld.sshfl [vmem:[#allocation1 + $0x38] sm:$0xff pattern:$0x73625140]
    %v302 = vpack.c.bf16 %v286, %v286
    %v303 = vpack.c.bf16 %v287, %v287
    %v304 = vpack.c.bf16 %v288, %v288
    %v305 = vpack.c.bf16 %v289, %v289
    %v306 = vpack.c.bf16 %v290, %v290
    %v307 = vpack.c.bf16 %v291, %v291
    %v308 = vpack.c.bf16 %v292, %v292
    %v309 = vpack.c.bf16 %v293, %v293
    %v311 = vperm.slane %v278, 0
    %v441 = vunpack.c.l.b16 %v86
    %v442 = vunpack.c.l.b16 %v87
    %v443 = vunpack.c.l.b16 %v88
    %v444 = vunpack.c.l.b16 %v89
    %v445 = vunpack.c.l.b16 %v90
    %v446 = vunpack.c.l.b16 %v91
    %v447 = vunpack.c.l.b16 %v92
    %v448 = vunpack.c.l.b16 %v93
    %v449 = vunpack.c.l.b16 %v94
    %v450 = vunpack.c.l.b16 %v95
    %v451 = vunpack.c.l.b16 %v96
    %v452 = vunpack.c.l.b16 %v97
    %v453 = vunpack.c.l.b16 %v98
    %v454 = vunpack.c.l.b16 %v99
    %v455 = vunpack.c.l.b16 %v100
    %v456 = vunpack.c.l.b16 %v101
    %v457 = vunpack.c.l.b16 %v102
    %v458 = vunpack.c.l.b16 %v103
    %v459 = vunpack.c.l.b16 %v104
    %v460 = vunpack.c.l.b16 %v105
    %v461 = vunpack.c.l.b16 %v106
    %v462 = vunpack.c.l.b16 %v107
    %v463 = vunpack.c.l.b16 %v108
    %v464 = vunpack.c.l.b16 %v109
    %v465 = vunpack.c.l.b16 %v110
    %v466 = vunpack.c.l.b16 %v111
    %v467 = vunpack.c.l.b16 %v112
    %v468 = vunpack.c.l.b16 %v113
    %v469 = vunpack.c.l.b16 %v114
    %v470 = vunpack.c.l.b16 %v115
    %v471 = vunpack.c.l.b16 %v116
    %v472 = vunpack.c.l.b16 %v117
    %v473 = vunpack.c.l.b16 %v118
    %v474 = vunpack.c.l.b16 %v119
    %v475 = vunpack.c.l.b16 %v120
    %v476 = vunpack.c.l.b16 %v121
    %v477 = vunpack.c.l.b16 %v122
    %v478 = vunpack.c.l.b16 %v123
    %v479 = vunpack.c.l.b16 %v124
    %v480 = vunpack.c.l.b16 %v125
    %v481 = vunpack.c.l.b16 %v126
    %v482 = vunpack.c.l.b16 %v127
    %v483 = vunpack.c.l.b16 %v128
    %v484 = vunpack.c.l.b16 %v129
    %v485 = vunpack.c.l.b16 %v130
    %v486 = vunpack.c.l.b16 %v131
    %v487 = vunpack.c.l.b16 %v132
    %v488 = vunpack.c.l.b16 %v133
    %v489 = vunpack.c.l.b16 %v134
    %v490 = vunpack.c.l.b16 %v135
    %v491 = vunpack.c.l.b16 %v136
    %v492 = vunpack.c.l.b16 %v137
    %v493 = vunpack.c.l.b16 %v138
    %v494 = vunpack.c.l.b16 %v139
    %v495 = vunpack.c.l.b16 %v140
    %v496 = vunpack.c.l.b16 %v141
    %v497 = vunpack.c.l.b16 %v142
    %v498 = vunpack.c.l.b16 %v143
    %v499 = vunpack.c.l.b16 %v144
    %v500 = vunpack.c.l.b16 %v145
    %v501 = vunpack.c.l.b16 %v146
    %v502 = vunpack.c.l.b16 %v147
    %v503 = vunpack.c.l.b16 %v148
    %v504 = vunpack.c.l.b16 %v149
    %v505 = vunpack.c.l.b16 %v150
    %v506 = vunpack.c.l.b16 %v151
    %v507 = vunpack.c.l.b16 %v152
    %v508 = vunpack.c.l.b16 %v153
    %v509 = vunpack.c.l.b16 %v154
    %v510 = vunpack.c.l.b16 %v155
    %v511 = vunpack.c.l.b16 %v156
    %v512 = vunpack.c.l.b16 %v157
    %v513 = vunpack.c.l.b16 %v158
    %v514 = vunpack.c.l.b16 %v159
    %v515 = vunpack.c.l.b16 %v160
    %v516 = vunpack.c.l.b16 %v161
    %v517 = vunpack.c.l.b16 %v162
    %v518 = vunpack.c.l.b16 %v163
    %v519 = vunpack.c.l.b16 %v164
    %v520 = vunpack.c.l.b16 %v165
    %v521 = vunpack.c.l.b16 %v166
    %v522 = vunpack.c.l.b16 %v167
    %v523 = vunpack.c.l.b16 %v168
    %v524 = vunpack.c.l.b16 %v169
    %v525 = vunpack.c.l.b16 %v170
    %v526 = vunpack.c.l.b16 %v171
    %v527 = vunpack.c.l.b16 %v172
    %v528 = vunpack.c.l.b16 %v173
    %v529 = vunpack.c.l.b16 %v174
    %v530 = vunpack.c.l.b16 %v175
    %v531 = vunpack.c.l.b16 %v176
    %v532 = vunpack.c.l.b16 %v177
    %v533 = vunpack.c.l.b16 %v178
    %v534 = vunpack.c.l.b16 %v179
    %v535 = vunpack.c.l.b16 %v180
    %v536 = vunpack.c.l.b16 %v181
    %v537 = vunpack.c.l.b16 %v182
    %v538 = vunpack.c.l.b16 %v183
    %v539 = vunpack.c.l.b16 %v184
    %v540 = vunpack.c.l.b16 %v185
    %v541 = vunpack.c.l.b16 %v186
    %v542 = vunpack.c.l.b16 %v187
    %v543 = vunpack.c.l.b16 %v188
    %v544 = vunpack.c.l.b16 %v189
    %v545 = vunpack.c.l.b16 %v190
    %v546 = vunpack.c.l.b16 %v191
    %v547 = vunpack.c.l.b16 %v192
    %v548 = vunpack.c.l.b16 %v193
    %v549 = vunpack.c.l.b16 %v194
    %v550 = vunpack.c.l.b16 %v195
    %v551 = vunpack.c.l.b16 %v196
    %v552 = vunpack.c.l.b16 %v197
    %v553 = vunpack.c.l.b16 %v198
    %v554 = vunpack.c.l.b16 %v199
    %v555 = vunpack.c.l.b16 %v200
    %v556 = vunpack.c.l.b16 %v201
    %v557 = vunpack.c.l.b16 %v202
    %v558 = vunpack.c.l.b16 %v203
    %v559 = vunpack.c.l.b16 %v204
    %v560 = vunpack.c.l.b16 %v205
    %v561 = vunpack.c.l.b16 %v206
    %v562 = vunpack.c.l.b16 %v207
    %v563 = vunpack.c.l.b16 %v208
    %v564 = vunpack.c.l.b16 %v209
    %v565 = vunpack.c.l.b16 %v210
    %v566 = vunpack.c.l.b16 %v211
    %v567 = vunpack.c.l.b16 %v212
    %v568 = vunpack.c.l.b16 %v213
    %v569 = vpack.c.b16 %v442, %v441
    %v570 = vpack.c.b16 %v444, %v443
    %v571 = vpack.c.b16 %v446, %v445
    %v572 = vpack.c.b16 %v448, %v447
    %v573 = vpack.c.b16 %v450, %v449
    %v574 = vpack.c.b16 %v452, %v451
    %v575 = vpack.c.b16 %v454, %v453
    %v576 = vpack.c.b16 %v456, %v455
    %v577 = vpack.c.b16 %v458, %v457
    %v578 = vpack.c.b16 %v460, %v459
    %v579 = vpack.c.b16 %v462, %v461
    %v580 = vpack.c.b16 %v464, %v463
    %v581 = vpack.c.b16 %v466, %v465
    %v582 = vpack.c.b16 %v468, %v467
    %v583 = vpack.c.b16 %v470, %v469
    %v584 = vpack.c.b16 %v472, %v471
    %v585 = vpack.c.b16 %v474, %v473
    %v586 = vpack.c.b16 %v476, %v475
    %v587 = vpack.c.b16 %v478, %v477
    %v588 = vpack.c.b16 %v480, %v479
    %v589 = vpack.c.b16 %v482, %v481
    %v590 = vpack.c.b16 %v484, %v483
    %v591 = vpack.c.b16 %v486, %v485
    %v592 = vpack.c.b16 %v488, %v487
    %v593 = vpack.c.b16 %v490, %v489
    %v594 = vpack.c.b16 %v492, %v491
    %v595 = vpack.c.b16 %v494, %v493
    %v596 = vpack.c.b16 %v496, %v495
    %v597 = vpack.c.b16 %v498, %v497
    %v598 = vpack.c.b16 %v500, %v499
    %v599 = vpack.c.b16 %v502, %v501
    %v600 = vpack.c.b16 %v504, %v503
    %v601 = vpack.c.b16 %v506, %v505
    %v602 = vpack.c.b16 %v508, %v507
    %v603 = vpack.c.b16 %v510, %v509
    %v604 = vpack.c.b16 %v512, %v511
    %v605 = vpack.c.b16 %v514, %v513
    %v606 = vpack.c.b16 %v516, %v515
    %v607 = vpack.c.b16 %v518, %v517
    %v608 = vpack.c.b16 %v520, %v519
    %v609 = vpack.c.b16 %v522, %v521
    %v610 = vpack.c.b16 %v524, %v523
    %v611 = vpack.c.b16 %v526, %v525
    %v612 = vpack.c.b16 %v528, %v527
    %v613 = vpack.c.b16 %v530, %v529
    %v614 = vpack.c.b16 %v532, %v531
    %v615 = vpack.c.b16 %v534, %v533
    %v616 = vpack.c.b16 %v536, %v535
    %v617 = vpack.c.b16 %v538, %v537
    %v618 = vpack.c.b16 %v540, %v539
    %v619 = vpack.c.b16 %v542, %v541
    %v620 = vpack.c.b16 %v544, %v543
    %v621 = vpack.c.b16 %v546, %v545
    %v622 = vpack.c.b16 %v548, %v547
    %v623 = vpack.c.b16 %v550, %v549
    %v624 = vpack.c.b16 %v552, %v551
    %v625 = vpack.c.b16 %v554, %v553
    %v626 = vpack.c.b16 %v556, %v555
    %v627 = vpack.c.b16 %v558, %v557
    %v628 = vpack.c.b16 %v560, %v559
    %v629 = vpack.c.b16 %v562, %v561
    %v630 = vpack.c.b16 %v564, %v563
    %v631 = vpack.c.b16 %v566, %v565
    %v632 = vpack.c.b16 %v568, %v567
    %697 = vmatpush.bf16.msra.mxu0 %v576
    %698 = vmatpush.bf16.msra.mxu0 %v575
    %699 = vmatpush.bf16.msra.mxu0 %v574
    %700 = vmatpush.bf16.msra.mxu0 %v573
    %701 = vmatpush.bf16.msra.mxu0 %v572
    %702 = vmatpush.bf16.msra.mxu0 %v571
    %703 = vmatpush.bf16.msra.mxu0 %v570
    %704 = vmatpush.bf16.msra.mxu0 %v569
    %705 = vmatmul.bf16.gmra.mxu0 %v302
    %v706 = vpop.f32.mrf.mxu0
    %v707 = vadd.f32 %v311, %v706
    %v708 = vpop.f32.mrf.mxu0
    %709 = vdwg.mxu0
    %710 = vmatpush.bf16.msra.mxu0 %v584
    %711 = vmatpush.bf16.msra.mxu0 %v583
    %712 = vmatpush.bf16.msra.mxu0 %v582
    %713 = vmatpush.bf16.msra.mxu0 %v581
    %714 = vmatpush.bf16.msra.mxu0 %v580
    %715 = vmatpush.bf16.msra.mxu0 %v579
    %716 = vmatpush.bf16.msra.mxu0 %v578
    %717 = vmatpush.bf16.msra.mxu0 %v577
    %718 = vmatmul.bf16.gmra.mxu0 %v303
    %v719 = vpop.f32.mrf.mxu0
    %v720 = vadd.f32 %v707, %v719
    %v721 = vpop.f32.mrf.mxu0
    %722 = vdwg.mxu0
    %723 = vmatpush.bf16.msra.mxu0 %v592
    %724 = vmatpush.bf16.msra.mxu0 %v591
    %725 = vmatpush.bf16.msra.mxu0 %v590
    %726 = vmatpush.bf16.msra.mxu0 %v589
    %727 = vmatpush.bf16.msra.mxu0 %v588
    %728 = vmatpush.bf16.msra.mxu0 %v587
    %729 = vmatpush.bf16.msra.mxu0 %v586
    %730 = vmatpush.bf16.msra.mxu0 %v585
    %731 = vmatmul.bf16.gmra.mxu0 %v304
    %v732 = vpop.f32.mrf.mxu0
    %v733 = vadd.f32 %v720, %v732
    %v734 = vpop.f32.mrf.mxu0
    %735 = vdwg.mxu0
    %736 = vmatpush.bf16.msra.mxu0 %v600
    %737 = vmatpush.bf16.msra.mxu0 %v599
    %738 = vmatpush.bf16.msra.mxu0 %v598
    %739 = vmatpush.bf16.msra.mxu0 %v597
    %740 = vmatpush.bf16.msra.mxu0 %v596
    %741 = vmatpush.bf16.msra.mxu0 %v595
    %742 = vmatpush.bf16.msra.mxu0 %v594
    %743 = vmatpush.bf16.msra.mxu0 %v593
    %744 = vmatmul.bf16.gmra.mxu0 %v305
    %v745 = vpop.f32.mrf.mxu0
    %v746 = vadd.f32 %v733, %v745
    %v747 = vpop.f32.mrf.mxu0
    %748 = vdwg.mxu0
    %749 = vmatpush.bf16.msra.mxu0 %v608
    %750 = vmatpush.bf16.msra.mxu0 %v607
    %751 = vmatpush.bf16.msra.mxu0 %v606
    %752 = vmatpush.bf16.msra.mxu0 %v605
    %753 = vmatpush.bf16.msra.mxu0 %v604
    %754 = vmatpush.bf16.msra.mxu0 %v603
    %755 = vmatpush.bf16.msra.mxu0 %v602
    %756 = vmatpush.bf16.msra.mxu0 %v601
    %757 = vmatmul.bf16.gmra.mxu0 %v306
    %v758 = vpop.f32.mrf.mxu0
    %v759 = vadd.f32 %v746, %v758
    %v760 = vpop.f32.mrf.mxu0
    %761 = vdwg.mxu0
    %762 = vmatpush.bf16.msra.mxu0 %v616
    %763 = vmatpush.bf16.msra.mxu0 %v615
    %764 = vmatpush.bf16.msra.mxu0 %v614
    %765 = vmatpush.bf16.msra.mxu0 %v613
    %766 = vmatpush.bf16.msra.mxu0 %v612
    %767 = vmatpush.bf16.msra.mxu0 %v611
    %768 = vmatpush.bf16.msra.mxu0 %v610
    %769 = vmatpush.bf16.msra.mxu0 %v609
    %770 = vmatmul.bf16.gmra.mxu0 %v307
    %v771 = vpop.f32.mrf.mxu0
    %v772 = vadd.f32 %v759, %v771
    %v773 = vpop.f32.mrf.mxu0
    %774 = vdwg.mxu0
    %775 = vmatpush.bf16.msra.mxu0 %v624
    %776 = vmatpush.bf16.msra.mxu0 %v623
    %777 = vmatpush.bf16.msra.mxu0 %v622
    %778 = vmatpush.bf16.msra.mxu0 %v621
    %779 = vmatpush.bf16.msra.mxu0 %v620
    %780 = vmatpush.bf16.msra.mxu0 %v619
    %781 = vmatpush.bf16.msra.mxu0 %v618
    %782 = vmatpush.bf16.msra.mxu0 %v617
    %783 = vmatmul.bf16.gmra.mxu0 %v308
    %v784 = vpop.f32.mrf.mxu0
    %v785 = vadd.f32 %v772, %v784
    %v786 = vpop.f32.mrf.mxu0
    %787 = vdwg.mxu0
    %788 = vmatpush.bf16.msra.mxu0 %v632
    %789 = vmatpush.bf16.msra.mxu0 %v631
    %790 = vmatpush.bf16.msra.mxu0 %v630
    %791 = vmatpush.bf16.msra.mxu0 %v629
    %792 = vmatpush.bf16.msra.mxu0 %v628
    %793 = vmatpush.bf16.msra.mxu0 %v627
    %794 = vmatpush.bf16.msra.mxu0 %v626
    %795 = vmatpush.bf16.msra.mxu0 %v625
    %796 = vmatmul.bf16.gmra.mxu0 %v309
    %v797 = vpop.f32.mrf.mxu0
    %v798 = vadd.f32 %v785, %v797
    %v799 = vpop.f32.mrf.mxu0
    %800 = vdwg.mxu0
    %vm801 = vcmask 1041408
    %v802 = vsel %vm801, %v798, -inf
    %803 = vmax.xlane.f32.xlu0 %v802
    %v804 = vpop.xlane.xlu0 %803
    %v805 = vsub.f32 %v798, %v804
    %v806 = vmul.f32 %v805, 1.442695
    %v807 = vpow.pop %v806
    %v808 = vsel %vm801, %v807, 0.0
    %809 = vadd.xlane.f32.xlu0 %v808
    %v810 = vpop.xlane.xlu0 %809
    %v811 = vlog2.pop %v810
    %v812 = vmul.f32 %v811, 0.6931472
    %v813 = vsub.f32 %v805, %v812
    %v814 = vmul.f32 %v813, 1.442695
    %v815 = vpow.pop %v814
    %v816 = vld [vmem:[#allocation5] sm:$0xff]
    %v817 = vld [vmem:[#allocation5 + $0x8] sm:$0xff]
    %v818 = vmul.f32 %v816, %v816
    %v819 = vmul.f32 %v817, %v817
    %822 = vst [vmem:[#allocation1] ss:$4 sm:$0xff] %v818
    %s823 = scalar_lea.vmem [#allocation1], 32
    %824 = vst [vmem:[%s823] ss:$4 sm:$0xff] %v819
    %v825 = vld.sshfl [vmem:[#allocation1] sm:$0xff pattern:$0x73625140]
    %v826 = vld.sshfl [vmem:[#allocation1 + $0x8] sm:$0xff pattern:$0x73625140]
    %v827 = vld.sshfl [vmem:[#allocation1 + $0x10] sm:$0xff pattern:$0x73625140]
    %v828 = vld.sshfl [vmem:[#allocation1 + $0x18] sm:$0xff pattern:$0x73625140]
    %v829 = vld.sshfl [vmem:[#allocation1 + $0x20] sm:$0xff pattern:$0x73625140]
    %v830 = vld.sshfl [vmem:[#allocation1 + $0x28] sm:$0xff pattern:$0x73625140]
    %v831 = vld.sshfl [vmem:[#allocation1 + $0x30] sm:$0xff pattern:$0x73625140]
    %v832 = vld.sshfl [vmem:[#allocation1 + $0x38] sm:$0xff pattern:$0x73625140]
    %v841 = vsel %vm801, %v825, 0.0
    %v842 = vsel %vm801, %v826, 0.0
    %v843 = vadd.f32 %v841, %v842
    %v844 = vsel %vm801, %v827, 0.0
    %v845 = vadd.f32 %v843, %v844
    %v846 = vsel %vm801, %v828, 0.0
    %v847 = vadd.f32 %v845, %v846
    %v848 = vsel %vm801, %v829, 0.0
    %v849 = vadd.f32 %v847, %v848
    %v850 = vsel %vm801, %v830, 0.0
    %v851 = vadd.f32 %v849, %v850
    %v852 = vsel %vm801, %v831, 0.0
    %v853 = vadd.f32 %v851, %v852
    %v854 = vsel %vm801, %v832, 0.0
    %v855 = vadd.f32 %v853, %v854
    %856 = vadd.xlane.f32.xlu0 %v855
    %v857 = vpop.xlane.xlu0 %856
    %v858 = vrsqrt.pop %v857
    %v859 = vmul.f32 %v858, %v857
    %v860 = vmul.f32 %v859, %v858
    %v861 = vmul.f32 0.5, %v860
    %v862 = vsub.f32 1.5, %v861
    %v863 = vmul.f32 %v858, %v862
    %v864 = vmul.f32 %v857, %v863
    %vm865 = vcmp.eq.f32.partialorder %v857, inf
    %v866 = vsel %vm865, %v857, %v864
    %vm867 = vcmp.eq.f32.partialorder %v857, 0.0
    %v868 = vand.u32 %v857, 2147483648
    %v869 = vsel %vm867, %v868, %v866
    %v870 = vadd.f32 %v869, 1e-08
    %v871 = vrcp.pop %v870
    %v872 = vmul.f32 %v870, %v871
    %v873 = vsub.f32 1.0, %v872
    %v874 = vmul.f32 %v871, %v873
    %v875 = vadd.f32 %v871, %v874
    %vm876 = vweird.f32 %v870
    %vm877 = vweird.f32 %v871
    %vm878 = vmor %vm876, %vm877
    %v879 = vsel %vm878, %v871, %v875
    %v880 = vand.u32 2147483647, %v870
    %vm881 = vcmp.eq.f32.partialorder %v880, 8.507059e+37
    %v882 = vand.u32 %v870, 2147483648
    %v883 = vor.u32 1.1754944e-38, %v882
    %v884 = vsel %vm881, %v883, %v879
    %v885 = vmul.f32 1.0, %v884
    %v888 = vunpack.c.l.s4 269488144
    %v889 = vunpack.c.0.s8 %v888
    %v890 = vperm.slane %v885, %v889
    %v892 = vmul.f32 %v816, %v890
    %v893 = vmul.f32 %v817, %v890
    %896 = vst [vmem:[#allocation1] ss:$4 sm:$0xff] %v892
    %s897 = scalar_lea.vmem [#allocation1], 32
    %898 = vst [vmem:[%s897] ss:$4 sm:$0xff] %v893
    %v899 = vld.sshfl [vmem:[#allocation1] sm:$0xff pattern:$0x73625140]
    %v900 = vld.sshfl [vmem:[#allocation1 + $0x8] sm:$0xff pattern:$0x73625140]
    %v901 = vld.sshfl [vmem:[#allocation1 + $0x10] sm:$0xff pattern:$0x73625140]
    %v902 = vld.sshfl [vmem:[#allocation1 + $0x18] sm:$0xff pattern:$0x73625140]
    %v903 = vld.sshfl [vmem:[#allocation1 + $0x20] sm:$0xff pattern:$0x73625140]
    %v904 = vld.sshfl [vmem:[#allocation1 + $0x28] sm:$0xff pattern:$0x73625140]
    %v905 = vld.sshfl [vmem:[#allocation1 + $0x30] sm:$0xff pattern:$0x73625140]
    %v906 = vld.sshfl [vmem:[#allocation1 + $0x38] sm:$0xff pattern:$0x73625140]
    %v915 = vpack.c.bf16 %v899, %v899
    %v916 = vpack.c.bf16 %v900, %v900
    %v917 = vpack.c.bf16 %v901, %v901
    %v918 = vpack.c.bf16 %v902, %v902
    %v919 = vpack.c.bf16 %v903, %v903
    %v920 = vpack.c.bf16 %v904, %v904
    %v921 = vpack.c.bf16 %v905, %v905
    %v922 = vpack.c.bf16 %v906, %v906
    %923 = vmatpush.bf16.msra.mxu0 %v576
    %924 = vmatpush.bf16.msra.mxu0 %v575
    %925 = vmatpush.bf16.msra.mxu0 %v574
    %926 = vmatpush.bf16.msra.mxu0 %v573
    %927 = vmatpush.bf16.msra.mxu0 %v572
    %928 = vmatpush.bf16.msra.mxu0 %v571
    %929 = vmatpush.bf16.msra.mxu0 %v570
    %930 = vmatpush.bf16.msra.mxu0 %v569
    %931 = vmatmul.bf16.gmra.mxu0 %v915
    %v932 = vpop.f32.mrf.mxu0
    %v933 = vadd.f32 0.0, %v932
    %v934 = vpop.f32.mrf.mxu0
    %935 = vdwg.mxu0
    %936 = vmatpush.bf16.msra.mxu0 %v584
    %937 = vmatpush.bf16.msra.mxu0 %v583
    %938 = vmatpush.bf16.msra.mxu0 %v582
    %939 = vmatpush.bf16.msra.mxu0 %v581
    %940 = vmatpush.bf16.msra.mxu0 %v580
    %941 = vmatpush.bf16.msra.mxu0 %v579
    %942 = vmatpush.bf16.msra.mxu0 %v578
    %943 = vmatpush.bf16.msra.mxu0 %v577
    %944 = vmatmul.bf16.gmra.mxu0 %v916
    %v945 = vpop.f32.mrf.mxu0
    %v946 = vadd.f32 %v933, %v945
    %v947 = vpop.f32.mrf.mxu0
    %948 = vdwg.mxu0
    %949 = vmatpush.bf16.msra.mxu0 %v592
    %950 = vmatpush.bf16.msra.mxu0 %v591
    %951 = vmatpush.bf16.msra.mxu0 %v590
    %952 = vmatpush.bf16.msra.mxu0 %v589
    %953 = vmatpush.bf16.msra.mxu0 %v588
    %954 = vmatpush.bf16.msra.mxu0 %v587
    %955 = vmatpush.bf16.msra.mxu0 %v586
    %956 = vmatpush.bf16.msra.mxu0 %v585
    %957 = vmatmul.bf16.gmra.mxu0 %v917
    %v958 = vpop.f32.mrf.mxu0
    %v959 = vadd.f32 %v946, %v958
    %v960 = vpop.f32.mrf.mxu0
    %961 = vdwg.mxu0
    %962 = vmatpush.bf16.msra.mxu0 %v600
    %963 = vmatpush.bf16.msra.mxu0 %v599
    %964 = vmatpush.bf16.msra.mxu0 %v598
    %965 = vmatpush.bf16.msra.mxu0 %v597
    %966 = vmatpush.bf16.msra.mxu0 %v596
    %967 = vmatpush.bf16.msra.mxu0 %v595
    %968 = vmatpush.bf16.msra.mxu0 %v594
    %969 = vmatpush.bf16.msra.mxu0 %v593
    %970 = vmatmul.bf16.gmra.mxu0 %v918
    %v971 = vpop.f32.mrf.mxu0
    %v972 = vadd.f32 %v959, %v971
    %v973 = vpop.f32.mrf.mxu0
    %974 = vdwg.mxu0
    %975 = vmatpush.bf16.msra.mxu0 %v608
    %976 = vmatpush.bf16.msra.mxu0 %v607
    %977 = vmatpush.bf16.msra.mxu0 %v606
    %978 = vmatpush.bf16.msra.mxu0 %v605
    %979 = vmatpush.bf16.msra.mxu0 %v604
    %980 = vmatpush.bf16.msra.mxu0 %v603
    %981 = vmatpush.bf16.msra.mxu0 %v602
    %982 = vmatpush.bf16.msra.mxu0 %v601
    %983 = vmatmul.bf16.gmra.mxu0 %v919
    %v984 = vpop.f32.mrf.mxu0
    %v985 = vadd.f32 %v972, %v984
    %v986 = vpop.f32.mrf.mxu0
    %987 = vdwg.mxu0
    %988 = vmatpush.bf16.msra.mxu0 %v616
    %989 = vmatpush.bf16.msra.mxu0 %v615
    %990 = vmatpush.bf16.msra.mxu0 %v614
    %991 = vmatpush.bf16.msra.mxu0 %v613
    %992 = vmatpush.bf16.msra.mxu0 %v612
    %993 = vmatpush.bf16.msra.mxu0 %v611
    %994 = vmatpush.bf16.msra.mxu0 %v610
    %995 = vmatpush.bf16.msra.mxu0 %v609
    %996 = vmatmul.bf16.gmra.mxu0 %v920
    %v997 = vpop.f32.mrf.mxu0
    %v998 = vadd.f32 %v985, %v997
    %v999 = vpop.f32.mrf.mxu0
    %1000 = vdwg.mxu0
    %1001 = vmatpush.bf16.msra.mxu0 %v624
    %1002 = vmatpush.bf16.msra.mxu0 %v623
    %1003 = vmatpush.bf16.msra.mxu0 %v622
    %1004 = vmatpush.bf16.msra.mxu0 %v621
    %1005 = vmatpush.bf16.msra.mxu0 %v620
    %1006 = vmatpush.bf16.msra.mxu0 %v619
    %1007 = vmatpush.bf16.msra.mxu0 %v618
    %1008 = vmatpush.bf16.msra.mxu0 %v617
    %1009 = vmatmul.bf16.gmra.mxu0 %v921
    %v1010 = vpop.f32.mrf.mxu0
    %v1011 = vadd.f32 %v998, %v1010
    %v1012 = vpop.f32.mrf.mxu0
    %1013 = vdwg.mxu0
    %1014 = vmatpush.bf16.msra.mxu0 %v632
    %1015 = vmatpush.bf16.msra.mxu0 %v631
    %1016 = vmatpush.bf16.msra.mxu0 %v630
    %1017 = vmatpush.bf16.msra.mxu0 %v629
    %1018 = vmatpush.bf16.msra.mxu0 %v628
    %1019 = vmatpush.bf16.msra.mxu0 %v627
    %1020 = vmatpush.bf16.msra.mxu0 %v626
    %1021 = vmatpush.bf16.msra.mxu0 %v625
    %1022 = vmatmul.bf16.gmra.mxu0 %v922
    %v1023 = vpop.f32.mrf.mxu0
    %v1024 = vadd.f32 %v1011, %v1023
    %v1025 = vpop.f32.mrf.mxu0
    %1026 = vdwg.mxu0
    %v1027 = vmul.f32 %v1024, 10.0
    %v1028 = vadd.f32 %v798, %v1027
    %v1029 = vsel %vm801, %v1028, -inf
    %1030 = vmax.xlane.f32.xlu0 %v1029
    %v1031 = vpop.xlane.xlu0 %1030
    %v1032 = vsub.f32 %v1028, %v1031
    %v1033 = vmul.f32 %v1032, 1.442695
    %v1034 = vpow.pop %v1033
    %v1035 = vsel %vm801, %v1034, 0.0
    %1036 = vadd.xlane.f32.xlu0 %v1035
    %v1037 = vpop.xlane.xlu0 %1036
    %v1038 = vlog2.pop %v1037
    %v1039 = vmul.f32 %v1038, 0.6931472
    %v1040 = vsub.f32 %v1032, %v1039
    %v1041 = vmul.f32 %v1040, 1.442695
    %v1042 = vpow.pop %v1041
    %v1043 = vsub.f32 %v1042, %v815
    %v1044 = vpack.c.bf16 %v1043, %v1043
    %v1109 = vunpack.c.l.b16 %v214
    %v1110 = vunpack.c.h.b16 %v214
    %v1111 = vunpack.c.l.b16 %v215
    %v1112 = vunpack.c.h.b16 %v215
    %v1113 = vunpack.c.l.b16 %v216
    %v1114 = vunpack.c.h.b16 %v216
    %v1115 = vunpack.c.l.b16 %v217
    %v1116 = vunpack.c.h.b16 %v217
    %v1117 = vunpack.c.l.b16 %v218
    %v1118 = vunpack.c.h.b16 %v218
    %v1119 = vunpack.c.l.b16 %v219
    %v1120 = vunpack.c.h.b16 %v219
    %v1121 = vunpack.c.l.b16 %v220
    %v1122 = vunpack.c.h.b16 %v220
    %v1123 = vunpack.c.l.b16 %v221
    %v1124 = vunpack.c.h.b16 %v221
    %v1125 = vunpack.c.l.b16 %v222
    %v1126 = vunpack.c.h.b16 %v222
    %v1127 = vunpack.c.l.b16 %v223
    %v1128 = vunpack.c.h.b16 %v223
    %v1129 = vunpack.c.l.b16 %v224
    %v1130 = vunpack.c.h.b16 %v224
    %v1131 = vunpack.c.l.b16 %v225
    %v1132 = vunpack.c.h.b16 %v225
    %v1133 = vunpack.c.l.b16 %v226
    %v1134 = vunpack.c.h.b16 %v226
    %v1135 = vunpack.c.l.b16 %v227
    %v1136 = vunpack.c.h.b16 %v227
    %v1137 = vunpack.c.l.b16 %v228
    %v1138 = vunpack.c.h.b16 %v228
    %v1139 = vunpack.c.l.b16 %v229
    %v1140 = vunpack.c.h.b16 %v229
    %v1141 = vunpack.c.l.b16 %v230
    %v1142 = vunpack.c.h.b16 %v230
    %v1143 = vunpack.c.l.b16 %v231
    %v1144 = vunpack.c.h.b16 %v231
    %v1145 = vunpack.c.l.b16 %v232
    %v1146 = vunpack.c.h.b16 %v232
    %v1147 = vunpack.c.l.b16 %v233
    %v1148 = vunpack.c.h.b16 %v233
    %v1149 = vunpack.c.l.b16 %v234
    %v1150 = vunpack.c.h.b16 %v234
    %v1151 = vunpack.c.l.b16 %v235
    %v1152 = vunpack.c.h.b16 %v235
    %v1153 = vunpack.c.l.b16 %v236
    %v1154 = vunpack.c.h.b16 %v236
    %v1155 = vunpack.c.l.b16 %v237
    %v1156 = vunpack.c.h.b16 %v237
    %v1157 = vunpack.c.l.b16 %v238
    %v1158 = vunpack.c.h.b16 %v238
    %v1159 = vunpack.c.l.b16 %v239
    %v1160 = vunpack.c.h.b16 %v239
    %v1161 = vunpack.c.l.b16 %v240
    %v1162 = vunpack.c.h.b16 %v240
    %v1163 = vunpack.c.l.b16 %v241
    %v1164 = vunpack.c.h.b16 %v241
    %v1165 = vunpack.c.l.b16 %v242
    %v1166 = vunpack.c.h.b16 %v242
    %v1167 = vunpack.c.l.b16 %v243
    %v1168 = vunpack.c.h.b16 %v243
    %v1169 = vunpack.c.l.b16 %v244
    %v1170 = vunpack.c.h.b16 %v244
    %v1171 = vunpack.c.l.b16 %v245
    %v1172 = vunpack.c.h.b16 %v245
    %v1173 = vunpack.c.l.b16 %v246
    %v1174 = vunpack.c.h.b16 %v246
    %v1175 = vunpack.c.l.b16 %v247
    %v1176 = vunpack.c.h.b16 %v247
    %v1177 = vunpack.c.l.b16 %v248
    %v1178 = vunpack.c.h.b16 %v248
    %v1179 = vunpack.c.l.b16 %v249
    %v1180 = vunpack.c.h.b16 %v249
    %v1181 = vunpack.c.l.b16 %v250
    %v1182 = vunpack.c.h.b16 %v250
    %v1183 = vunpack.c.l.b16 %v251
    %v1184 = vunpack.c.h.b16 %v251
    %v1185 = vunpack.c.l.b16 %v252
    %v1186 = vunpack.c.h.b16 %v252
    %v1187 = vunpack.c.l.b16 %v253
    %v1188 = vunpack.c.h.b16 %v253
    %v1189 = vunpack.c.l.b16 %v254
    %v1190 = vunpack.c.h.b16 %v254
    %v1191 = vunpack.c.l.b16 %v255
    %v1192 = vunpack.c.h.b16 %v255
    %v1193 = vunpack.c.l.b16 %v256
    %v1194 = vunpack.c.h.b16 %v256
    %v1195 = vunpack.c.l.b16 %v257
    %v1196 = vunpack.c.h.b16 %v257
    %v1197 = vunpack.c.l.b16 %v258
    %v1198 = vunpack.c.h.b16 %v258
    %v1199 = vunpack.c.l.b16 %v259
    %v1200 = vunpack.c.h.b16 %v259
    %v1201 = vunpack.c.l.b16 %v260
    %v1202 = vunpack.c.h.b16 %v260
    %v1203 = vunpack.c.l.b16 %v261
    %v1204 = vunpack.c.h.b16 %v261
    %v1205 = vunpack.c.l.b16 %v262
    %v1206 = vunpack.c.h.b16 %v262
    %v1207 = vunpack.c.l.b16 %v263
    %v1208 = vunpack.c.h.b16 %v263
    %v1209 = vunpack.c.l.b16 %v264
    %v1210 = vunpack.c.h.b16 %v264
    %v1211 = vunpack.c.l.b16 %v265
    %v1212 = vunpack.c.h.b16 %v265
    %v1213 = vunpack.c.l.b16 %v266
    %v1214 = vunpack.c.h.b16 %v266
    %v1215 = vunpack.c.l.b16 %v267
    %v1216 = vunpack.c.h.b16 %v267
    %v1217 = vunpack.c.l.b16 %v268
    %v1218 = vunpack.c.h.b16 %v268
    %v1219 = vunpack.c.l.b16 %v269
    %v1220 = vunpack.c.h.b16 %v269
    %v1221 = vunpack.c.l.b16 %v270
    %v1222 = vunpack.c.h.b16 %v270
    %v1223 = vunpack.c.l.b16 %v271
    %v1224 = vunpack.c.h.b16 %v271
    %v1225 = vunpack.c.l.b16 %v272
    %v1226 = vunpack.c.h.b16 %v272
    %v1227 = vunpack.c.l.b16 %v273
    %v1228 = vunpack.c.h.b16 %v273
    %v1229 = vunpack.c.l.b16 %v274
    %v1230 = vunpack.c.h.b16 %v274
    %v1231 = vunpack.c.l.b16 %v275
    %v1232 = vunpack.c.h.b16 %v275
    %v1233 = vunpack.c.l.b16 %v276
    %v1234 = vunpack.c.h.b16 %v276
    %v1235 = vunpack.c.l.b16 %v277
    %v1236 = vunpack.c.h.b16 %v277
    %v1237 = vpack.c.b16 %v1117, %v1109
    %v1238 = vpack.c.b16 %v1118, %v1110
    %v1239 = vpack.c.b16 %v1119, %v1111
    %v1240 = vpack.c.b16 %v1120, %v1112
    %v1241 = vpack.c.b16 %v1121, %v1113
    %v1242 = vpack.c.b16 %v1122, %v1114
    %v1243 = vpack.c.b16 %v1123, %v1115
    %v1244 = vpack.c.b16 %v1124, %v1116
    %v1245 = vpack.c.b16 %v1133, %v1125
    %v1246 = vpack.c.b16 %v1134, %v1126
    %v1247 = vpack.c.b16 %v1135, %v1127
    %v1248 = vpack.c.b16 %v1136, %v1128
    %v1249 = vpack.c.b16 %v1137, %v1129
    %v1250 = vpack.c.b16 %v1138, %v1130
    %v1251 = vpack.c.b16 %v1139, %v1131
    %v1252 = vpack.c.b16 %v1140, %v1132
    %v1253 = vpack.c.b16 %v1149, %v1141
    %v1254 = vpack.c.b16 %v1150, %v1142
    %v1255 = vpack.c.b16 %v1151, %v1143
    %v1256 = vpack.c.b16 %v1152, %v1144
    %v1257 = vpack.c.b16 %v1153, %v1145
    %v1258 = vpack.c.b16 %v1154, %v1146
    %v1259 = vpack.c.b16 %v1155, %v1147
    %v1260 = vpack.c.b16 %v1156, %v1148
    %v1261 = vpack.c.b16 %v1165, %v1157
    %v1262 = vpack.c.b16 %v1166, %v1158
    %v1263 = vpack.c.b16 %v1167, %v1159
    %v1264 = vpack.c.b16 %v1168, %v1160
    %v1265 = vpack.c.b16 %v1169, %v1161
    %v1266 = vpack.c.b16 %v1170, %v1162
    %v1267 = vpack.c.b16 %v1171, %v1163
    %v1268 = vpack.c.b16 %v1172, %v1164
    %v1269 = vpack.c.b16 %v1181, %v1173
    %v1270 = vpack.c.b16 %v1182, %v1174
    %v1271 = vpack.c.b16 %v1183, %v1175
    %v1272 = vpack.c.b16 %v1184, %v1176
    %v1273 = vpack.c.b16 %v1185, %v1177
    %v1274 = vpack.c.b16 %v1186, %v1178
    %v1275 = vpack.c.b16 %v1187, %v1179
    %v1276 = vpack.c.b16 %v1188, %v1180
    %v1277 = vpack.c.b16 %v1197, %v1189
    %v1278 = vpack.c.b16 %v1198, %v1190
    %v1279 = vpack.c.b16 %v1199, %v1191
    %v1280 = vpack.c.b16 %v1200, %v1192
    %v1281 = vpack.c.b16 %v1201, %v1193
    %v1282 = vpack.c.b16 %v1202, %v1194
    %v1283 = vpack.c.b16 %v1203, %v1195
    %v1284 = vpack.c.b16 %v1204, %v1196
    %v1285 = vpack.c.b16 %v1213, %v1205
    %v1286 = vpack.c.b16 %v1214, %v1206
    %v1287 = vpack.c.b16 %v1215, %v1207
    %v1288 = vpack.c.b16 %v1216, %v1208
    %v1289 = vpack.c.b16 %v1217, %v1209
    %v1290 = vpack.c.b16 %v1218, %v1210
    %v1291 = vpack.c.b16 %v1219, %v1211
    %v1292 = vpack.c.b16 %v1220, %v1212
    %v1293 = vpack.c.b16 %v1229, %v1221
    %v1294 = vpack.c.b16 %v1230, %v1222
    %v1295 = vpack.c.b16 %v1231, %v1223
    %v1296 = vpack.c.b16 %v1232, %v1224
    %v1297 = vpack.c.b16 %v1233, %v1225
    %v1298 = vpack.c.b16 %v1234, %v1226
    %v1299 = vpack.c.b16 %v1235, %v1227
    %v1300 = vpack.c.b16 %v1236, %v1228
    %1365 = vmatpush.bf16.msra.mxu0 %v1293
    %1366 = vmatpush.bf16.msra.mxu0 %v1285
    %1367 = vmatpush.bf16.msra.mxu0 %v1277
    %1368 = vmatpush.bf16.msra.mxu0 %v1269
    %1369 = vmatpush.bf16.msra.mxu0 %v1261
    %1370 = vmatpush.bf16.msra.mxu0 %v1253
    %1371 = vmatpush.bf16.msra.mxu0 %v1245
    %1372 = vmatpush.bf16.msra.mxu0 %v1237
    %1373 = vmatmul.bf16.gmra.mxu0 %v1044
    %v1374 = vpop.f32.mrf.mxu0
    %v1375 = vadd.f32 0.0, %v1374
    %v1376 = vpop.f32.mrf.mxu0
    %1377 = vdwg.mxu0
    %1378 = vmatpush.bf16.msra.mxu0 %v1294
    %1379 = vmatpush.bf16.msra.mxu0 %v1286
    %1380 = vmatpush.bf16.msra.mxu0 %v1278
    %1381 = vmatpush.bf16.msra.mxu0 %v1270
    %1382 = vmatpush.bf16.msra.mxu0 %v1262
    %1383 = vmatpush.bf16.msra.mxu0 %v1254
    %1384 = vmatpush.bf16.msra.mxu0 %v1246
    %1385 = vmatpush.bf16.msra.mxu0 %v1238
    %1386 = vmatmul.bf16.gmra.mxu0 %v1044
    %v1387 = vpop.f32.mrf.mxu0
    %v1388 = vadd.f32 0.0, %v1387
    %v1389 = vpop.f32.mrf.mxu0
    %1390 = vdwg.mxu0
    %1391 = vmatpush.bf16.msra.mxu0 %v1295
    %1392 = vmatpush.bf16.msra.mxu0 %v1287
    %1393 = vmatpush.bf16.msra.mxu0 %v1279
    %1394 = vmatpush.bf16.msra.mxu0 %v1271
    %1395 = vmatpush.bf16.msra.mxu0 %v1263
    %1396 = vmatpush.bf16.msra.mxu0 %v1255
    %1397 = vmatpush.bf16.msra.mxu0 %v1247
    %1398 = vmatpush.bf16.msra.mxu0 %v1239
    %1399 = vmatmul.bf16.gmra.mxu0 %v1044
    %v1400 = vpop.f32.mrf.mxu0
    %v1401 = vadd.f32 0.0, %v1400
    %v1402 = vpop.f32.mrf.mxu0
    %1403 = vdwg.mxu0
    %1404 = vmatpush.bf16.msra.mxu0 %v1296
    %1405 = vmatpush.bf16.msra.mxu0 %v1288
    %1406 = vmatpush.bf16.msra.mxu0 %v1280
    %1407 = vmatpush.bf16.msra.mxu0 %v1272
    %1408 = vmatpush.bf16.msra.mxu0 %v1264
    %1409 = vmatpush.bf16.msra.mxu0 %v1256
    %1410 = vmatpush.bf16.msra.mxu0 %v1248
    %1411 = vmatpush.bf16.msra.mxu0 %v1240
    %1412 = vmatmul.bf16.gmra.mxu0 %v1044
    %v1413 = vpop.f32.mrf.mxu0
    %v1414 = vadd.f32 0.0, %v1413
    %v1415 = vpop.f32.mrf.mxu0
    %1416 = vdwg.mxu0
    %1417 = vmatpush.bf16.msra.mxu0 %v1297
    %1418 = vmatpush.bf16.msra.mxu0 %v1289
    %1419 = vmatpush.bf16.msra.mxu0 %v1281
    %1420 = vmatpush.bf16.msra.mxu0 %v1273
    %1421 = vmatpush.bf16.msra.mxu0 %v1265
    %1422 = vmatpush.bf16.msra.mxu0 %v1257
    %1423 = vmatpush.bf16.msra.mxu0 %v1249
    %1424 = vmatpush.bf16.msra.mxu0 %v1241
    %1425 = vmatmul.bf16.gmra.mxu0 %v1044
    %v1426 = vpop.f32.mrf.mxu0
    %v1427 = vadd.f32 0.0, %v1426
    %v1428 = vpop.f32.mrf.mxu0
    %1429 = vdwg.mxu0
    %1430 = vmatpush.bf16.msra.mxu0 %v1298
    %1431 = vmatpush.bf16.msra.mxu0 %v1290
    %1432 = vmatpush.bf16.msra.mxu0 %v1282
    %1433 = vmatpush.bf16.msra.mxu0 %v1274
    %1434 = vmatpush.bf16.msra.mxu0 %v1266
    %1435 = vmatpush.bf16.msra.mxu0 %v1258
    %1436 = vmatpush.bf16.msra.mxu0 %v1250
    %1437 = vmatpush.bf16.msra.mxu0 %v1242
    %1438 = vmatmul.bf16.gmra.mxu0 %v1044
    %v1439 = vpop.f32.mrf.mxu0
    %v1440 = vadd.f32 0.0, %v1439
    %v1441 = vpop.f32.mrf.mxu0
    %1442 = vdwg.mxu0
    %1443 = vmatpush.bf16.msra.mxu0 %v1299
    %1444 = vmatpush.bf16.msra.mxu0 %v1291
    %1445 = vmatpush.bf16.msra.mxu0 %v1283
    %1446 = vmatpush.bf16.msra.mxu0 %v1275
    %1447 = vmatpush.bf16.msra.mxu0 %v1267
    %1448 = vmatpush.bf16.msra.mxu0 %v1259
    %1449 = vmatpush.bf16.msra.mxu0 %v1251
    %1450 = vmatpush.bf16.msra.mxu0 %v1243
    %1451 = vmatmul.bf16.gmra.mxu0 %v1044
    %v1452 = vpop.f32.mrf.mxu0
    %v1453 = vadd.f32 0.0, %v1452
    %v1454 = vpop.f32.mrf.mxu0
    %1455 = vdwg.mxu0
    %1456 = vmatpush.bf16.msra.mxu0 %v1300
    %1457 = vmatpush.bf16.msra.mxu0 %v1292
    %1458 = vmatpush.bf16.msra.mxu0 %v1284
    %1459 = vmatpush.bf16.msra.mxu0 %v1276
    %1460 = vmatpush.bf16.msra.mxu0 %v1268
    %1461 = vmatpush.bf16.msra.mxu0 %v1260
    %1462 = vmatpush.bf16.msra.mxu0 %v1252
    %1463 = vmatpush.bf16.msra.mxu0 %v1244
    %1464 = vmatmul.bf16.gmra.mxu0 %v1044
    %v1465 = vpop.f32.mrf.mxu0
    %v1466 = vadd.f32 0.0, %v1465
    %v1467 = vpop.f32.mrf.mxu0
    %1468 = vdwg.mxu0
    %v1469 = vmul.f32 %v1375, %v1375
    %v1470 = vmul.f32 %v1388, %v1388
    %v1471 = vmul.f32 %v1401, %v1401
    %v1472 = vmul.f32 %v1414, %v1414
    %v1473 = vmul.f32 %v1427, %v1427
    %v1474 = vmul.f32 %v1440, %v1440
    %v1475 = vmul.f32 %v1453, %v1453
    %v1476 = vmul.f32 %v1466, %v1466
    %v1477 = vsel %vm801, %v1469, 0.0
    %v1478 = vsel %vm801, %v1470, 0.0
    %v1479 = vadd.f32 %v1477, %v1478
    %v1480 = vsel %vm801, %v1471, 0.0
    %v1481 = vadd.f32 %v1479, %v1480
    %v1482 = vsel %vm801, %v1472, 0.0
    %v1483 = vadd.f32 %v1481, %v1482
    %v1484 = vsel %vm801, %v1473, 0.0
    %v1485 = vadd.f32 %v1483, %v1484
    %v1486 = vsel %vm801, %v1474, 0.0
    %v1487 = vadd.f32 %v1485, %v1486
    %v1488 = vsel %vm801, %v1475, 0.0
    %v1489 = vadd.f32 %v1487, %v1488
    %v1490 = vsel %vm801, %v1476, 0.0
    %v1491 = vadd.f32 %v1489, %v1490
    %1492 = vadd.xlane.f32.xlu0 %v1491
    %v1493 = vpop.xlane.xlu0 %1492
    %v1494 = vrsqrt.pop %v1493
    %v1495 = vmul.f32 %v1494, %v1493
    %v1496 = vmul.f32 %v1495, %v1494
    %v1497 = vmul.f32 0.5, %v1496
    %v1498 = vsub.f32 1.5, %v1497
    %v1499 = vmul.f32 %v1494, %v1498
    %v1500 = vmul.f32 %v1493, %v1499
    %vm1501 = vcmp.eq.f32.partialorder %v1493, inf
    %v1502 = vsel %vm1501, %v1493, %v1500
    %vm1503 = vcmp.eq.f32.partialorder %v1493, 0.0
    %v1504 = vand.u32 %v1493, 2147483648
    %v1505 = vsel %vm1503, %v1504, %v1502
    %v1506 = vadd.f32 %v1505, 1e-08
    %v1507 = vrcp.pop %v1506
    %v1508 = vmul.f32 %v1506, %v1507
    %v1509 = vsub.f32 1.0, %v1508
    %v1510 = vmul.f32 %v1507, %v1509
    %v1511 = vadd.f32 %v1507, %v1510
    %vm1512 = vweird.f32 %v1506
    %vm1513 = vweird.f32 %v1507
    %vm1514 = vmor %vm1512, %vm1513
    %v1515 = vsel %vm1514, %v1507, %v1511
    %v1516 = vand.u32 2147483647, %v1506
    %vm1517 = vcmp.eq.f32.partialorder %v1516, 8.507059e+37
    %v1518 = vand.u32 %v1506, 2147483648
    %v1519 = vor.u32 1.1754944e-38, %v1518
    %v1520 = vsel %vm1517, %v1519, %v1515
    %v1521 = vmul.f32 1.0, %v1520
    %v1522 = vmul.f32 %v1375, %v1521
    %v1523 = vmul.f32 %v1388, %v1521
    %v1524 = vmul.f32 %v1401, %v1521
    %v1525 = vmul.f32 %v1414, %v1521
    %v1526 = vmul.f32 %v1427, %v1521
    %v1527 = vmul.f32 %v1440, %v1521
    %v1528 = vmul.f32 %v1453, %v1521
    %v1529 = vmul.f32 %v1466, %v1521
    %v1530 = vpack.c.bf16 %v1522, %v1522
    %v1531 = vpack.c.bf16 %v1523, %v1523
    %v1532 = vpack.c.bf16 %v1524, %v1524
    %v1533 = vpack.c.bf16 %v1525, %v1525
    %v1534 = vpack.c.bf16 %v1526, %v1526
    %v1535 = vpack.c.bf16 %v1527, %v1527
    %v1536 = vpack.c.bf16 %v1528, %v1528
    %v1537 = vpack.c.bf16 %v1529, %v1529
    %1538 = vmatpush.bf16.msra.mxu0 %v576
    %1539 = vmatpush.bf16.msra.mxu0 %v575
    %1540 = vmatpush.bf16.msra.mxu0 %v574
    %1541 = vmatpush.bf16.msra.mxu0 %v573
    %1542 = vmatpush.bf16.msra.mxu0 %v572
    %1543 = vmatpush.bf16.msra.mxu0 %v571
    %1544 = vmatpush.bf16.msra.mxu0 %v570
    %1545 = vmatpush.bf16.msra.mxu0 %v569
    %1546 = vmatmul.bf16.gmra.mxu0 %v1530
    %v1547 = vpop.f32.mrf.mxu0
    %v1548 = vadd.f32 0.0, %v1547
    %v1549 = vpop.f32.mrf.mxu0
    %1550 = vdwg.mxu0
    %1551 = vmatpush.bf16.msra.mxu0 %v584
    %1552 = vmatpush.bf16.msra.mxu0 %v583
    %1553 = vmatpush.bf16.msra.mxu0 %v582
    %1554 = vmatpush.bf16.msra.mxu0 %v581
    %1555 = vmatpush.bf16.msra.mxu0 %v580
    %1556 = vmatpush.bf16.msra.mxu0 %v579
    %1557 = vmatpush.bf16.msra.mxu0 %v578
    %1558 = vmatpush.bf16.msra.mxu0 %v577
    %1559 = vmatmul.bf16.gmra.mxu0 %v1531
    %v1560 = vpop.f32.mrf.mxu0
    %v1561 = vadd.f32 %v1548, %v1560
    %v1562 = vpop.f32.mrf.mxu0
    %1563 = vdwg.mxu0
    %1564 = vmatpush.bf16.msra.mxu0 %v592
    %1565 = vmatpush.bf16.msra.mxu0 %v591
    %1566 = vmatpush.bf16.msra.mxu0 %v590
    %1567 = vmatpush.bf16.msra.mxu0 %v589
    %1568 = vmatpush.bf16.msra.mxu0 %v588
    %1569 = vmatpush.bf16.msra.mxu0 %v587
    %1570 = vmatpush.bf16.msra.mxu0 %v586
    %1571 = vmatpush.bf16.msra.mxu0 %v585
    %1572 = vmatmul.bf16.gmra.mxu0 %v1532
    %v1573 = vpop.f32.mrf.mxu0
    %v1574 = vadd.f32 %v1561, %v1573
    %v1575 = vpop.f32.mrf.mxu0
    %1576 = vdwg.mxu0
    %1577 = vmatpush.bf16.msra.mxu0 %v600
    %1578 = vmatpush.bf16.msra.mxu0 %v599
    %1579 = vmatpush.bf16.msra.mxu0 %v598
    %1580 = vmatpush.bf16.msra.mxu0 %v597
    %1581 = vmatpush.bf16.msra.mxu0 %v596
    %1582 = vmatpush.bf16.msra.mxu0 %v595
    %1583 = vmatpush.bf16.msra.mxu0 %v594
    %1584 = vmatpush.bf16.msra.mxu0 %v593
    %1585 = vmatmul.bf16.gmra.mxu0 %v1533
    %v1586 = vpop.f32.mrf.mxu0
    %v1587 = vadd.f32 %v1574, %v1586
    %v1588 = vpop.f32.mrf.mxu0
    %1589 = vdwg.mxu0
    %1590 = vmatpush.bf16.msra.mxu0 %v608
    %1591 = vmatpush.bf16.msra.mxu0 %v607
    %1592 = vmatpush.bf16.msra.mxu0 %v606
    %1593 = vmatpush.bf16.msra.mxu0 %v605
    %1594 = vmatpush.bf16.msra.mxu0 %v604
    %1595 = vmatpush.bf16.msra.mxu0 %v603
    %1596 = vmatpush.bf16.msra.mxu0 %v602
    %1597 = vmatpush.bf16.msra.mxu0 %v601
    %1598 = vmatmul.bf16.gmra.mxu0 %v1534
    %v1599 = vpop.f32.mrf.mxu0
    %v1600 = vadd.f32 %v1587, %v1599
    %v1601 = vpop.f32.mrf.mxu0
    %1602 = vdwg.mxu0
    %1603 = vmatpush.bf16.msra.mxu0 %v616
    %1604 = vmatpush.bf16.msra.mxu0 %v615
    %1605 = vmatpush.bf16.msra.mxu0 %v614
    %1606 = vmatpush.bf16.msra.mxu0 %v613
    %1607 = vmatpush.bf16.msra.mxu0 %v612
    %1608 = vmatpush.bf16.msra.mxu0 %v611
    %1609 = vmatpush.bf16.msra.mxu0 %v610
    %1610 = vmatpush.bf16.msra.mxu0 %v609
    %1611 = vmatmul.bf16.gmra.mxu0 %v1535
    %v1612 = vpop.f32.mrf.mxu0
    %v1613 = vadd.f32 %v1600, %v1612
    %v1614 = vpop.f32.mrf.mxu0
    %1615 = vdwg.mxu0
    %1616 = vmatpush.bf16.msra.mxu0 %v624
    %1617 = vmatpush.bf16.msra.mxu0 %v623
    %1618 = vmatpush.bf16.msra.mxu0 %v622
    %1619 = vmatpush.bf16.msra.mxu0 %v621
    %1620 = vmatpush.bf16.msra.mxu0 %v620
    %1621 = vmatpush.bf16.msra.mxu0 %v619
    %1622 = vmatpush.bf16.msra.mxu0 %v618
    %1623 = vmatpush.bf16.msra.mxu0 %v617
    %1624 = vmatmul.bf16.gmra.mxu0 %v1536
    %v1625 = vpop.f32.mrf.mxu0
    %v1626 = vadd.f32 %v1613, %v1625
    %v1627 = vpop.f32.mrf.mxu0
    %1628 = vdwg.mxu0
    %1629 = vmatpush.bf16.msra.mxu0 %v632
    %1630 = vmatpush.bf16.msra.mxu0 %v631
    %1631 = vmatpush.bf16.msra.mxu0 %v630
    %1632 = vmatpush.bf16.msra.mxu0 %v629
    %1633 = vmatpush.bf16.msra.mxu0 %v628
    %1634 = vmatpush.bf16.msra.mxu0 %v627
    %1635 = vmatpush.bf16.msra.mxu0 %v626
    %1636 = vmatpush.bf16.msra.mxu0 %v625
    %1637 = vmatmul.bf16.gmra.mxu0 %v1537
    %v1638 = vpop.f32.mrf.mxu0
    %v1639 = vadd.f32 %v1626, %v1638
    %v1640 = vpop.f32.mrf.mxu0
    %1641 = vdwg.mxu0
    %v1642 = vadd.f32 %v798, %v1639
    %v1643 = vsel %vm801, %v1642, -inf
    %1644 = vmax.xlane.f32.xlu0 %v1643
    %v1645 = vpop.xlane.xlu0 %1644
    %v1646 = vsub.f32 %v1642, %v1645
    %v1647 = vmul.f32 %v1646, 1.442695
    %v1648 = vpow.pop %v1647
    %v1649 = vsel %vm801, %v1648, 0.0
    %1650 = vadd.xlane.f32.xlu0 %v1649
    %v1651 = vpop.xlane.xlu0 %1650
    %v1652 = vlog2.pop %v1651
    %v1653 = vmul.f32 %v1652, 0.6931472
    %v1654 = vsub.f32 %v1646, %v1653
    %v1655 = vsub.f32 %v813, %v1654
    %v1656 = vmul.f32 %v815, %v1655
    %s1657 = sld [smem:[#allocation10]]
    %v1658 = vsel %vm801, %v1656, 0.0
    %1659 = vadd.xlane.f32.xlu0 %v1658
    %v1660 = vpop.xlane.xlu0 %1659
    %v1661 = vrot.slane %v1660, 4
    %v1662 = vadd.f32 %v1660, %v1661
    %v1663 = vrot.slane %v1662, 2
    %v1664 = vadd.f32 %v1662, %v1663
    %v1665 = vrot.slane %v1664, 1
    %v1666 = vadd.f32 %v1664, %v1665
    %s1667 = vtos %v1666
    %s1668 = smul.f32 %s1667, 0.5
    %s1669 = sadd.f32 %s1657, %s1668
    %s1670 = scalar_lea.smem [#allocation10], 0
    %1671 = sst [smem:[%s1670]] %s1669
    // Predicated region
    $region42: #{tpu_custom_call.1} parent=1 // pred_check
      _
    $region43: #{tpu_custom_call.1} parent=1 // pred_check_branch
      %1673 = sbr.rel (0) target = $region45
    $region44: #{tpu_custom_call.1} parent=1 // pred_region
      %1675 = vsyncadd [#allocation4], 0
      %s1677 = sshll.u32 %s5, 4
      %s1678 = int_to_ptr.hbm [resolvable:$true] %s1677
      %1680 = dma.smem_to_hbm [#allocation10], 16, %s1678, [#allocation4]
    $region45: #{tpu_custom_call.1} parent=1 // pred_fallthru
      _
    // Predicated region
    $region46: #{tpu_custom_call.1} parent=1 // pred_check
      _
    $region47: #{tpu_custom_call.1} parent=1 // pred_check_branch
      %1682 = sbr.rel (0) target = $region49
    $region48: #{tpu_custom_call.1} parent=1 // pred_region
      %1684 = dma.done [#allocation4], 16
    $region49: #{tpu_custom_call.1} parent=1 // pred_fallthru
      _
    %1685 = sfence
    %1686 = vsyncpa [#allocation3], 1
    %1687 = vsyncpa [#allocation6], 1
    %1688 = vsyncpa [#allocation9], 1
    %1689 = vsyncpa [#allocation4], 1

</llo_original>
